<compile_context>
chip_gen: v7x
topology: tpu7x:2x2x1
jax: 0.10.0
libtpu: 0.0.40
codegen_flags: <defaults>
</compile_context>

<pallas_src>
import math
from functools import partial

import jax
import jax.numpy as jnp
from jax.experimental import pallas as pl
from jax.experimental.pallas import tpu as pltpu

_MIB = 1024 * 1024


def _generation_tuning():
    """Per-generation VMEM budget + tile target (review: derive, don't hardcode)."""
    cap = 64 * _MIB
    try:
        info = pltpu.get_tpu_info()
        cap = int(getattr(info, "vmem_capacity_bytes", cap))
    except Exception:
        pass
    # ~96 MiB on 128 MiB parts (v5e/v6e), ~48 MiB on 64 MiB parts (v7x).
    vmem_limit = max(32 * _MIB, min((3 * cap) // 4, 96 * _MIB))
    tile_target = 512 if cap >= 128 * _MIB else 256
    return vmem_limit, tile_target


def _pick_tile(n, target):
    """Largest tile <= target that divides n and keeps the sublane dim aligned."""
    if n <= target:
        return n
    for t in range(target, 7, -1):
        if n % t == 0 and t % 8 == 0:
            return t
    return n


def _check_token_tile(tile, n, row_bytes, vmem_limit, what):
    # Guard the _pick_tile fallback (review correctness concern): a whole-axis
    # block that cannot fit (double-buffered) in the VMEM budget is an error,
    # not a silent serialized/OOM compile.
    if 2 * tile * row_bytes > vmem_limit // 2:
        raise ValueError(
            f"{what}: no tile <= target divides {n}; the fallback block of "
            f"{tile} rows would overflow the VMEM budget. Pad the inputs to a "
            f"multiple of 8 tokens or pass an explicit tile size.")


def _divisor_groups(heads, per_head_bytes, budget, cap=None):
    """Largest divisor g of `heads` with g*per_head_bytes <= budget (and g <= cap)."""
    g = 1
    for cand in range(1, heads + 1):
        if heads % cand:
            continue
        if cap is not None and cand > cap:
            break
        if cand * per_head_bytes <= budget:
            g = cand
    return g


# ----------------------------------------------------------------------------
# Kernel 1: fused Q/K/V projection, token-flattened, G heads per grid step.
# ----------------------------------------------------------------------------
def _qkv_proj_kernel(xq_ref, xk_ref, xv_ref, wq_ref, wk_ref, wv_ref,
                     bq_ref, bk_ref, bv_ref, q_ref, k_ref, v_ref, *, g):
    # x*_ref: (TM, D)   w*_ref: (G, D, d_k)   b*_ref: (G, 1, d_k) f32
    # q/k/v_ref: (G, TM, d_k)
    xq = xq_ref[...]
    xk = xk_ref[...]
    xv = xv_ref[...]
    for h in range(g):                      # static unroll over the head group
        yq = jnp.dot(xq, wq_ref[h], preferred_element_type=jnp.float32) + bq_ref[h]
        q_ref[h] = yq.astype(q_ref.dtype)   # softmax scale already folded in
        yk = jnp.dot(xk, wk_ref[h], preferred_element_type=jnp.float32) + bk_ref[h]
        k_ref[h] = yk.astype(k_ref.dtype)
        yv = jnp.dot(xv, wv_ref[h], preferred_element_type=jnp.float32) + bv_ref[h]
        v_ref[h] = yv.astype(v_ref.dtype)


def _proj_kernel(x_ref, w_ref, b_ref, o_ref, *, g):
    # Fallback (cross-attention with s_q != s_kv): one input, one output.
    x = x_ref[...]
    for h in range(g):
        y = jnp.dot(x, w_ref[h], preferred_element_type=jnp.float32) + b_ref[h]
        o_ref[h] = y.astype(o_ref.dtype)


# ----------------------------------------------------------------------------
# Kernel 2: flash-style attention (online softmax, streamed KV, head groups).
# ----------------------------------------------------------------------------
def _flash_attention_kernel(q_ref, k_ref, v_ref, o_ref, m_ref, l_ref, acc_ref):
    # q_ref: (G, TQ, d_k)   k/v_ref: (G, TKV, d_k)   o_ref: (G, TQ, d_k)
    # m/l_ref: (G, TQ, 1) f32   acc_ref: (G, TQ, d_k) f32
    kv = pl.program_id(3)

    @pl.when(kv == 0)
    def _():
        m_ref[...] = jnp.full_like(m_ref, -jnp.inf)
        l_ref[...] = jnp.zeros_like(l_ref)
        acc_ref[...] = jnp.zeros_like(acc_ref)

    q = q_ref[...]
    k = k_ref[...]
    v = v_ref[...]

    # Head-batched scores; contracts d_k directly (no K transpose materialised).
    # The 1/sqrt(d_k) scale is folded into the Q weights on the host.
    s = jnp.einsum("gqd,gkd->gqk", q, k, preferred_element_type=jnp.float32)

    m_prev = m_ref[...]
    m_new = jnp.maximum(m_prev, jnp.max(s, axis=-1, keepdims=True))
    alpha = jnp.exp(m_prev - m_new)
    p = jnp.exp(s - m_new)                       # f32 probs (unnormalized)
    l_ref[...] = alpha * l_ref[...] + jnp.sum(p, axis=-1, keepdims=True)
    # TODO(synk): dropout(p) skipped (identity / eval mode).
    acc_ref[...] = alpha * acc_ref[...] + jnp.einsum(
        "gqk,gkd->gqd", p.astype(v.dtype), v, preferred_element_type=jnp.float32)
    m_ref[...] = m_new

    @pl.when(kv == pl.num_programs(3) - 1)
    def _():
        denom = l_ref[...]
        inv = pl.reciprocal(denom, approx=True)  # EUP slot (otherwise idle)
        inv = inv * (2.0 - denom * inv)          # one Newton step -> ~f32 exact
        # Normalize the (G,TQ,d_k) context, not the (G,TQ,TKV) probs.
        o_ref[...] = (acc_ref[...] * inv).astype(o_ref.dtype)


# ----------------------------------------------------------------------------
# Kernel 3: output projection, token-flattened, G heads per reduction step.
# ----------------------------------------------------------------------------
def _out_proj_kernel(x_ref, w_ref, b_ref, o_ref, acc_ref, *, g):
    # x_ref: (G, TM, d_k)  w_ref: (G, d_k, D)  b_ref: (1, D)  o/acc_ref: (TM, D)
    @pl.when(pl.program_id(1) == 0)
    def _():
        acc_ref[...] = jnp.zeros_like(acc_ref)

    acc = acc_ref[...]
    for h in range(g):                      # static unroll within one step
        acc = acc + jnp.dot(x_ref[h], w_ref[h], preferred_element_type=jnp.float32)
    acc_ref[...] = acc

    @pl.when(pl.program_id(1) == pl.num_programs(1) - 1)
    def _():
        o_ref[...] = (acc_ref[...] + b_ref[...]).astype(o_ref.dtype)


def multi_head_attention(query, key, value, params, *, heads,
                         compute_dtype=jnp.float32,
                         token_tile=None, q_tile=None, kv_tile=None):
    """query/key/value: (seq_len, batch, d_model) float32 (PyTorch layout)."""
    s_q, batch, d_model = query.shape
    s_kv = key.shape[0]
    assert key.shape == (s_kv, batch, d_model)
    assert value.shape == (s_kv, batch, d_model)
    assert d_model % heads == 0
    d_k = d_model // heads
    scale = 1.0 / math.sqrt(d_k)

    vmem_limit, tile_target = _generation_tuning()
    token_tile = token_tile or tile_target
    q_tile = q_tile or tile_target
    kv_tile = kv_tile or tile_target

    n_q, n_kv = batch * s_q, batch * s_kv
    tm_q = _pick_tile(n_q, token_tile)
    tm_kv = _pick_tile(n_kv, token_tile)
    tq = _pick_tile(s_q, q_tile)
    tkv = _pick_tile(s_kv, kv_tile)
    _check_token_tile(tm_q, n_q, d_model * 4, vmem_limit, "q tokens")
    _check_token_tile(tm_kv, n_kv, d_model * 4, vmem_limit, "kv tokens")
    _check_token_tile(tkv, s_kv, d_k * 4, vmem_limit, "kv sequence")

    bpe = jnp.dtype(compute_dtype).itemsize

    # --- head-group sizes (derived from the per-generation VMEM budget) -----
    proj_per_head = 2 * (3 * d_model * d_k * bpe + 3 * max(tm_q, tm_kv) * d_k * bpe)
    g_p = _divisor_groups(heads, proj_per_head, vmem_limit // 4, cap=8)

    attn_per_head = (2 * (tq * d_k * bpe + 2 * tkv * d_k * bpe + tq * d_k * bpe)
                     + tq * d_k * 4 + tq * tkv * 4 + 2 * tq * 4)
    g_a = _divisor_groups(heads, attn_per_head, vmem_limit // 3)
    # Keep >= 2 independent (parallel) work units so both v7x cores are fed.
    while g_a > 1 and batch * (heads // g_a) * (s_q // tq) < 2:
        g_a = max(d for d in range(1, g_a) if heads % d == 0)

    outp_per_head = 2 * (tm_q * d_k * bpe + d_k * d_model * bpe)
    g_o = _divisor_groups(heads, outp_per_head, vmem_limit // 4, cap=16)

    # --- layout: (S, B, D) -> (B*S, D) token-flattened ------------------------
    # TODO(synk): the input/output (S,B)<->(B,S) transposes could be folded into
    # index_maps when d_model % 128 == 0; kept as XLA transposes for generality.
    q_tok = jnp.transpose(query, (1, 0, 2)).reshape(n_q, d_model).astype(compute_dtype)
    k_tok = jnp.transpose(key, (1, 0, 2)).reshape(n_kv, d_model).astype(compute_dtype)
    v_tok = jnp.transpose(value, (1, 0, 2)).reshape(n_kv, d_model).astype(compute_dtype)

    # nn.Linear computes x @ W^T + b.  Pre-split weights per head on the host so
    # the kernels never slice / concat / transpose.  The softmax scale is folded
    # into the Q weights+bias (review: zero in-kernel VALU cost for scaling).
    def split_in_proj(w, s=1.0):
        return (jnp.transpose(w.reshape(heads, d_k, d_model), (0, 2, 1)) * s).astype(compute_dtype)

    def split_bias(b, s=1.0):
        return (b.reshape(heads, 1, d_k) * s).astype(jnp.float32)

    wq = split_in_proj(params["wq"], scale)
    bq = split_bias(params["bq"], scale)
    wk = split_in_proj(params["wk"])
    bk = split_bias(params["bk"])
    wv = split_in_proj(params["wv"])
    bv = split_bias(params["bv"])
    wo = jnp.transpose(params["wo"], (1, 0)).reshape(heads, d_k, d_model).astype(compute_dtype)
    bo = params["bo"].reshape(1, d_model).astype(jnp.float32)

    cparams_2d = pltpu.CompilerParams(
        dimension_semantics=("parallel", "parallel"),
        vmem_limit_bytes=vmem_limit)

    # --- Q/K/V projections ----------------------------------------------------
    if n_q == n_kv:
        # Fused single launch: three weight streams share one pipeline.
        q_h, k_h, v_h = pl.pallas_call(
            partial(_qkv_proj_kernel, g=g_p),
            out_shape=tuple(jax.ShapeDtypeStruct((heads, n_q, d_k), compute_dtype)
                            for _ in range(3)),
            grid_spec=pltpu.PrefetchScalarGridSpec(
                num_scalar_prefetch=0,
                grid=(n_q // tm_q, heads // g_p),
                in_specs=[
                    pl.BlockSpec((tm_q, d_model), lambda m, h: (m, 0)),
                    pl.BlockSpec((tm_q, d_model), lambda m, h: (m, 0)),
                    pl.BlockSpec((tm_q, d_model), lambda m, h: (m, 0)),
                    pl.BlockSpec((g_p, d_model, d_k), lambda m, h: (h, 0, 0)),
                    pl.BlockSpec((g_p, d_model, d_k), lambda m, h: (h, 0, 0)),
                    pl.BlockSpec((g_p, d_model, d_k), lambda m, h: (h, 0, 0)),
                    pl.BlockSpec((g_p, 1, d_k), lambda m, h: (h, 0, 0)),
                    pl.BlockSpec((g_p, 1, d_k), lambda m, h: (h, 0, 0)),
                    pl.BlockSpec((g_p, 1, d_k), lambda m, h: (h, 0, 0)),
                ],
                out_specs=[pl.BlockSpec((g_p, tm_q, d_k), lambda m, h: (h, m, 0))] * 3,
            ),
            compiler_params=cparams_2d,
        )(q_tok, k_tok, v_tok, wq, wk, wv, bq, bk, bv)
    else:
        # TODO(synk): cross-attention fallback keeps K and V as separate calls.
        def _project(x_tok, w_h, b_h, n_tok, tm):
            return pl.pallas_call(
                partial(_proj_kernel, g=g_p),
                out_shape=jax.ShapeDtypeStruct((heads, n_tok, d_k), compute_dtype),
                grid_spec=pltpu.PrefetchScalarGridSpec(
                    num_scalar_prefetch=0,
                    grid=(n_tok // tm, heads // g_p),
                    in_specs=[
                        pl.BlockSpec((tm, d_model), lambda m, h: (m, 0)),
                        pl.BlockSpec((g_p, d_model, d_k), lambda m, h: (h, 0, 0)),
                        pl.BlockSpec((g_p, 1, d_k), lambda m, h: (h, 0, 0)),
                    ],
                    out_specs=pl.BlockSpec((g_p, tm, d_k), lambda m, h: (h, m, 0)),
                ),
                compiler_params=cparams_2d,
            )(x_tok, w_h, b_h)

        q_h = _project(q_tok, wq, bq, n_q, tm_q)
        k_h = _project(k_tok, wk, bk, n_kv, tm_kv)
        v_h = _project(v_tok, wv, bv, n_kv, tm_kv)

    # Free reshapes (axis split of the token axis): (H, B*S, d_k) -> (H, B, S, d_k)
    q_hb = q_h.reshape(heads, batch, s_q, d_k)
    k_hb = k_h.reshape(heads, batch, s_kv, d_k)
    v_hb = v_h.reshape(heads, batch, s_kv, d_k)

    # --- flash attention: streamed KV, online softmax --------------------------
    ctx = pl.pallas_call(
        _flash_attention_kernel,
        out_shape=jax.ShapeDtypeStruct((heads, batch, s_q, d_k), compute_dtype),
        grid_spec=pltpu.PrefetchScalarGridSpec(
            num_scalar_prefetch=0,
            grid=(batch, heads // g_a, s_q // tq, s_kv // tkv),
            in_specs=[
                pl.BlockSpec((g_a, None, tq, d_k), lambda b, hg, qt, kt: (hg, b, qt, 0)),
                pl.BlockSpec((g_a, None, tkv, d_k), lambda b, hg, qt, kt: (hg, b, kt, 0)),
                pl.BlockSpec((g_a, None, tkv, d_k), lambda b, hg, qt, kt: (hg, b, kt, 0)),
            ],
            out_specs=pl.BlockSpec((g_a, None, tq, d_k), lambda b, hg, qt, kt: (hg, b, qt, 0)),
            scratch_shapes=[
                pltpu.VMEM((g_a, tq, 1), jnp.float32),   # running max m
                pltpu.VMEM((g_a, tq, 1), jnp.float32),   # running denom l
                pltpu.VMEM((g_a, tq, d_k), jnp.float32), # running context acc
            ],
        ),
        compiler_params=pltpu.CompilerParams(
            dimension_semantics=("parallel", "parallel", "parallel", "arbitrary"),
            vmem_limit_bytes=vmem_limit),
    )(q_hb, k_hb, v_hb)

    ctx_flat = ctx.reshape(heads, n_q, d_k)

    # --- output projection: token-flattened, G heads per reduction step --------
    out_tok = pl.pallas_call(
        partial(_out_proj_kernel, g=g_o),
        out_shape=jax.ShapeDtypeStruct((n_q, d_model), query.dtype),
        grid_spec=pltpu.PrefetchScalarGridSpec(
            num_scalar_prefetch=0,
            grid=(n_q // tm_q, heads // g_o),
            in_specs=[
                pl.BlockSpec((g_o, tm_q, d_k), lambda m, r: (r, m, 0)),
                pl.BlockSpec((g_o, d_k, d_model), lambda m, r: (r, 0, 0)),
                pl.BlockSpec((1, d_model), lambda m, r: (0, 0)),
            ],
            out_specs=pl.BlockSpec((tm_q, d_model), lambda m, r: (m, 0)),
            scratch_shapes=[pltpu.VMEM((tm_q, d_model), jnp.float32)],
        ),
        compiler_params=pltpu.CompilerParams(
            dimension_semantics=("parallel", "arbitrary"),
            vmem_limit_bytes=vmem_limit),
    )(ctx_flat, wo, bo)

    out = out_tok.reshape(batch, s_q, d_model)
    return jnp.transpose(out, (1, 0, 2))   # back to PyTorch (S, B, D) layout


def _reference(query, key, value, params, *, heads):
    """Pure-JAX reference mirroring the PyTorch einsum formulation."""
    seq_len, batch, d_model = query.shape
    d_k = d_model // heads
    scale = 1.0 / math.sqrt(d_k)

    def proj(x, w, b):
        y = jnp.einsum("sbm,om->sbo", x, w) + b
        return y.reshape(x.shape[0], batch, heads, d_k)

    q = proj(query, params["wq"], params["bq"])
    k = proj(key, params["wk"], params["bk"])
    v = proj(value, params["wv"], params["bv"])

    scores = jnp.einsum("ibhd,jbhd->ijbh", q, k) * scale
    attn = jax.nn.softmax(scores, axis=1)
    x = jnp.einsum("ijbh,jbhd->ibhd", attn, v)
    x = x.reshape(seq_len, batch, d_model)
    return jnp.einsum("sbm,om->sbo", x, params["wo"]) + params["bo"]


def _init_params(key, d_model, heads):
    d_k = d_model // heads
    ks = jax.random.split(key, 8)
    s = 1.0 / math.sqrt(d_model)
    return {
        "wq": jax.random.normal(ks[0], (heads * d_k, d_model), jnp.float32) * s,
        "bq": jax.random.normal(ks[1], (heads * d_k,), jnp.float32) * s,
        "wk": jax.random.normal(ks[2], (heads * d_k, d_model), jnp.float32) * s,
        "bk": jax.random.normal(ks[3], (heads * d_k,), jnp.float32) * s,
        "wv": jax.random.normal(ks[4], (heads * d_k, d_model), jnp.float32) * s,
        "bv": jax.random.normal(ks[5], (heads * d_k,), jnp.float32) * s,
        "wo": jax.random.normal(ks[6], (d_model, d_model), jnp.float32) * s,
        "bo": jax.random.normal(ks[7], (d_model,), jnp.float32) * s,
    }


if __name__ == "__main__":
    seq_len, batch, d_model, heads = 8, 2, 32, 4

    root = jax.random.PRNGKey(0)
    k_q, k_k, k_v, k_p = jax.random.split(root, 4)
    query = jax.random.normal(k_q, (seq_len, batch, d_model), jnp.float32)
    key = jax.random.normal(k_k, (seq_len, batch, d_model), jnp.float32)
    value = jax.random.normal(k_v, (seq_len, batch, d_model), jnp.float32)
    params = _init_params(k_p, d_model, heads)

    ref = _reference(query, key, value, params, heads=heads)

    # Default f32 path: must match the pure-JAX reference tightly.
    out = multi_head_attention(query, key, value, params, heads=heads)
    out = jax.block_until_ready(out)
    assert out.shape == (seq_len, batch, d_model)
    assert jnp.allclose(out, ref, atol=1e-4, rtol=1e-4), "f32 mismatch vs reference"

    # bf16 MXU path (recommended on v6e/v7x): bf16 operands, f32 accumulation
    # and softmax -> compared against the f32 reference at loose tolerance.
    out_bf16 = multi_head_attention(query, key, value, params, heads=heads,
                                    compute_dtype=jnp.bfloat16)
    out_bf16 = jax.block_until_ready(out_bf16)
    assert out_bf16.shape == (seq_len, batch, d_model)
    assert bool(jnp.isfinite(out_bf16).all())
    assert jnp.allclose(out_bf16, ref, atol=2.5e-1, rtol=2.5e-1), "bf16 mismatch vs reference"

    print("KERNEL_OK")
</pallas_src>

<mosaic_0001>
module attributes {stable_mosaic.version = 11 : i64} {
  func.func @_qkv_proj_kernel(%arg0: i32, %arg1: i32, %arg2: memref<16x32xf32, #tpu.memory_space<vmem>>, %arg3: memref<16x32xf32, #tpu.memory_space<vmem>>, %arg4: memref<16x32xf32, #tpu.memory_space<vmem>>, %arg5: memref<4x32x8xf32, #tpu.memory_space<vmem>>, %arg6: memref<4x32x8xf32, #tpu.memory_space<vmem>>, %arg7: memref<4x32x8xf32, #tpu.memory_space<vmem>>, %arg8: memref<4x1x8xf32, #tpu.memory_space<vmem>>, %arg9: memref<4x1x8xf32, #tpu.memory_space<vmem>>, %arg10: memref<4x1x8xf32, #tpu.memory_space<vmem>>, %arg11: memref<4x16x8xf32, #tpu.memory_space<vmem>>, %arg12: memref<4x16x8xf32, #tpu.memory_space<vmem>>, %arg13: memref<4x16x8xf32, #tpu.memory_space<vmem>>) attributes {dimension_semantics = [#tpu.dimension_semantics<parallel>, #tpu.dimension_semantics<parallel>], iteration_bounds = array<i64: 1, 1>, scalar_prefetch = 0 : i64, scratch_operands = 0 : i64, tpu.core_type = #tpu.core_type<tc>, window_params = [{transform_indices = @transform_0, window_bounds = array<i64: 16, 32>}, {transform_indices = @transform_1, window_bounds = array<i64: 16, 32>}, {transform_indices = @transform_2, window_bounds = array<i64: 16, 32>}, {transform_indices = @transform_3, window_bounds = array<i64: 4, 32, 8>}, {transform_indices = @transform_4, window_bounds = array<i64: 4, 32, 8>}, {transform_indices = @transform_5, window_bounds = array<i64: 4, 32, 8>}, {transform_indices = @transform_6, window_bounds = array<i64: 4, 1, 8>}, {transform_indices = @transform_7, window_bounds = array<i64: 4, 1, 8>}, {transform_indices = @transform_8, window_bounds = array<i64: 4, 1, 8>}, {transform_indices = @transform_9, window_bounds = array<i64: 4, 16, 8>}, {transform_indices = @transform_10, window_bounds = array<i64: 4, 16, 8>}, {transform_indices = @transform_11, window_bounds = array<i64: 4, 16, 8>}]} {
    %c0 = arith.constant 0 : index
    %c0_0 = arith.constant 0 : index
    %0 = vector.load %arg2[%c0, %c0_0] : memref<16x32xf32, #tpu.memory_space<vmem>>, vector<16x32xf32>
    %c0_1 = arith.constant 0 : index
    %c0_2 = arith.constant 0 : index
    %1 = vector.load %arg3[%c0_1, %c0_2] : memref<16x32xf32, #tpu.memory_space<vmem>>, vector<16x32xf32>
    %c0_3 = arith.constant 0 : index
    %c0_4 = arith.constant 0 : index
    %2 = vector.load %arg4[%c0_3, %c0_4] : memref<16x32xf32, #tpu.memory_space<vmem>>, vector<16x32xf32>
    %c0_5 = arith.constant 0 : index
    %c0_6 = arith.constant 0 : index
    %c0_7 = arith.constant 0 : index
    %3 = vector.load %arg5[%c0_5, %c0_6, %c0_7] : memref<4x32x8xf32, #tpu.memory_space<vmem>>, vector<1x32x8xf32>
    %4 = vector.shape_cast %3 : vector<1x32x8xf32> to vector<32x8xf32>
    %cst = arith.constant dense<0.000000e+00> : vector<16x8xf32>
    %5 = tpu.matmul %0, %4, %cst {dimension_numbers = #tpu.dot_dimension_numbers<[1], [0], [0], [1], [0, 0, 1, 1], [], []>} : vector<16x32xf32>, vector<32x8xf32>, vector<16x8xf32> -> vector<16x8xf32>
    %c0_8 = arith.constant 0 : index
    %c0_9 = arith.constant 0 : index
    %c0_10 = arith.constant 0 : index
    %6 = vector.load %arg8[%c0_8, %c0_9, %c0_10] : memref<4x1x8xf32, #tpu.memory_space<vmem>>, vector<1x1x8xf32>
    %7 = vector.shape_cast %6 : vector<1x1x8xf32> to vector<1x8xf32>
    %8 = vector.broadcast %7 : vector<1x8xf32> to vector<16x8xf32>
    %9 = arith.addf %5, %8 : vector<16x8xf32>
    %c0_11 = arith.constant 0 : index
    %c0_12 = arith.constant 0 : index
    %c0_13 = arith.constant 0 : index
    %10 = vector.load %arg11[%c0_11, %c0_12, %c0_13] : memref<4x16x8xf32, #tpu.memory_space<vmem>>, vector<1x16x8xf32>
    %11 = vector.shape_cast %10 : vector<1x16x8xf32> to vector<16x8xf32>
    %12 = vector.shape_cast %9 : vector<16x8xf32> to vector<1x16x8xf32>
    tpu.vector_store %arg11[%c0_11, %c0_12, %c0_13], %12 {strides = array<i32>} : memref<4x16x8xf32, #tpu.memory_space<vmem>>, vector<1x16x8xf32>,
    %c0_14 = arith.constant 0 : index
    %c0_15 = arith.constant 0 : index
    %c0_16 = arith.constant 0 : index
    %13 = vector.load %arg6[%c0_14, %c0_15, %c0_16] : memref<4x32x8xf32, #tpu.memory_space<vmem>>, vector<1x32x8xf32>
    %14 = vector.shape_cast %13 : vector<1x32x8xf32> to vector<32x8xf32>
    %cst_17 = arith.constant dense<0.000000e+00> : vector<16x8xf32>
    %15 = tpu.matmul %1, %14, %cst_17 {dimension_numbers = #tpu.dot_dimension_numbers<[1], [0], [0], [1], [0, 0, 1, 1], [], []>} : vector<16x32xf32>, vector<32x8xf32>, vector<16x8xf32> -> vector<16x8xf32>
    %c0_18 = arith.constant 0 : index
    %c0_19 = arith.constant 0 : index
    %c0_20 = arith.constant 0 : index
    %16 = vector.load %arg9[%c0_18, %c0_19, %c0_20] : memref<4x1x8xf32, #tpu.memory_space<vmem>>, vector<1x1x8xf32>
    %17 = vector.shape_cast %16 : vector<1x1x8xf32> to vector<1x8xf32>
    %18 = vector.broadcast %17 : vector<1x8xf32> to vector<16x8xf32>
    %19 = arith.addf %15, %18 : vector<16x8xf32>
    %c0_21 = arith.constant 0 : index
    %c0_22 = arith.constant 0 : index
    %c0_23 = arith.constant 0 : index
    %20 = vector.load %arg12[%c0_21, %c0_22, %c0_23] : memref<4x16x8xf32, #tpu.memory_space<vmem>>, vector<1x16x8xf32>
    %21 = vector.shape_cast %20 : vector<1x16x8xf32> to vector<16x8xf32>
    %22 = vector.shape_cast %19 : vector<16x8xf32> to vector<1x16x8xf32>
    tpu.vector_store %arg12[%c0_21, %c0_22, %c0_23], %22 {strides = array<i32>} : memref<4x16x8xf32, #tpu.memory_space<vmem>>, vector<1x16x8xf32>,
    %c0_24 = arith.constant 0 : index
    %c0_25 = arith.constant 0 : index
    %c0_26 = arith.constant 0 : index
    %23 = vector.load %arg7[%c0_24, %c0_25, %c0_26] : memref<4x32x8xf32, #tpu.memory_space<vmem>>, vector<1x32x8xf32>
    %24 = vector.shape_cast %23 : vector<1x32x8xf32> to vector<32x8xf32>
    %cst_27 = arith.constant dense<0.000000e+00> : vector<16x8xf32>
    %25 = tpu.matmul %2, %24, %cst_27 {dimension_numbers = #tpu.dot_dimension_numbers<[1], [0], [0], [1], [0, 0, 1, 1], [], []>} : vector<16x32xf32>, vector<32x8xf32>, vector<16x8xf32> -> vector<16x8xf32>
    %c0_28 = arith.constant 0 : index
    %c0_29 = arith.constant 0 : index
    %c0_30 = arith.constant 0 : index
    %26 = vector.load %arg10[%c0_28, %c0_29, %c0_30] : memref<4x1x8xf32, #tpu.memory_space<vmem>>, vector<1x1x8xf32>
    %27 = vector.shape_cast %26 : vector<1x1x8xf32> to vector<1x8xf32>
    %28 = vector.broadcast %27 : vector<1x8xf32> to vector<16x8xf32>
    %29 = arith.addf %25, %28 : vector<16x8xf32>
    %c0_31 = arith.constant 0 : index
    %c0_32 = arith.constant 0 : index
    %c0_33 = arith.constant 0 : index
    %30 = vector.load %arg13[%c0_31, %c0_32, %c0_33] : memref<4x16x8xf32, #tpu.memory_space<vmem>>, vector<1x16x8xf32>
    %31 = vector.shape_cast %30 : vector<1x16x8xf32> to vector<16x8xf32>
    %32 = vector.shape_cast %29 : vector<16x8xf32> to vector<1x16x8xf32>
    tpu.vector_store %arg13[%c0_31, %c0_32, %c0_33], %32 {strides = array<i32>} : memref<4x16x8xf32, #tpu.memory_space<vmem>>, vector<1x16x8xf32>,
    %c1 = arith.constant 1 : index
    %c0_34 = arith.constant 0 : index
    %c0_35 = arith.constant 0 : index
    %33 = vector.load %arg5[%c1, %c0_34, %c0_35] : memref<4x32x8xf32, #tpu.memory_space<vmem>>, vector<1x32x8xf32>
    %34 = vector.shape_cast %33 : vector<1x32x8xf32> to vector<32x8xf32>
    %cst_36 = arith.constant dense<0.000000e+00> : vector<16x8xf32>
    %35 = tpu.matmul %0, %34, %cst_36 {dimension_numbers = #tpu.dot_dimension_numbers<[1], [0], [0], [1], [0, 0, 1, 1], [], []>} : vector<16x32xf32>, vector<32x8xf32>, vector<16x8xf32> -> vector<16x8xf32>
    %c1_37 = arith.constant 1 : index
    %c0_38 = arith.constant 0 : index
    %c0_39 = arith.constant 0 : index
    %36 = vector.load %arg8[%c1_37, %c0_38, %c0_39] : memref<4x1x8xf32, #tpu.memory_space<vmem>>, vector<1x1x8xf32>
    %37 = vector.shape_cast %36 : vector<1x1x8xf32> to vector<1x8xf32>
    %38 = vector.broadcast %37 : vector<1x8xf32> to vector<16x8xf32>
    %39 = arith.addf %35, %38 : vector<16x8xf32>
    %c1_40 = arith.constant 1 : index
    %c0_41 = arith.constant 0 : index
    %c0_42 = arith.constant 0 : index
    %40 = vector.load %arg11[%c1_40, %c0_41, %c0_42] : memref<4x16x8xf32, #tpu.memory_space<vmem>>, vector<1x16x8xf32>
    %41 = vector.shape_cast %40 : vector<1x16x8xf32> to vector<16x8xf32>
    %42 = vector.shape_cast %39 : vector<16x8xf32> to vector<1x16x8xf32>
    tpu.vector_store %arg11[%c1_40, %c0_41, %c0_42], %42 {strides = array<i32>} : memref<4x16x8xf32, #tpu.memory_space<vmem>>, vector<1x16x8xf32>,
    %c1_43 = arith.constant 1 : index
    %c0_44 = arith.constant 0 : index
    %c0_45 = arith.constant 0 : index
    %43 = vector.load %arg6[%c1_43, %c0_44, %c0_45] : memref<4x32x8xf32, #tpu.memory_space<vmem>>, vector<1x32x8xf32>
    %44 = vector.shape_cast %43 : vector<1x32x8xf32> to vector<32x8xf32>
    %cst_46 = arith.constant dense<0.000000e+00> : vector<16x8xf32>
    %45 = tpu.matmul %1, %44, %cst_46 {dimension_numbers = #tpu.dot_dimension_numbers<[1], [0], [0], [1], [0, 0, 1, 1], [], []>} : vector<16x32xf32>, vector<32x8xf32>, vector<16x8xf32> -> vector<16x8xf32>
    %c1_47 = arith.constant 1 : index
    %c0_48 = arith.constant 0 : index
    %c0_49 = arith.constant 0 : index
    %46 = vector.load %arg9[%c1_47, %c0_48, %c0_49] : memref<4x1x8xf32, #tpu.memory_space<vmem>>, vector<1x1x8xf32>
    %47 = vector.shape_cast %46 : vector<1x1x8xf32> to vector<1x8xf32>
    %48 = vector.broadcast %47 : vector<1x8xf32> to vector<16x8xf32>
    %49 = arith.addf %45, %48 : vector<16x8xf32>
    %c1_50 = arith.constant 1 : index
    %c0_51 = arith.constant 0 : index
    %c0_52 = arith.constant 0 : index
    %50 = vector.load %arg12[%c1_50, %c0_51, %c0_52] : memref<4x16x8xf32, #tpu.memory_space<vmem>>, vector<1x16x8xf32>
    %51 = vector.shape_cast %50 : vector<1x16x8xf32> to vector<16x8xf32>
    %52 = vector.shape_cast %49 : vector<16x8xf32> to vector<1x16x8xf32>
    tpu.vector_store %arg12[%c1_50, %c0_51, %c0_52], %52 {strides = array<i32>} : memref<4x16x8xf32, #tpu.memory_space<vmem>>, vector<1x16x8xf32>,
    %c1_53 = arith.constant 1 : index
    %c0_54 = arith.constant 0 : index
    %c0_55 = arith.constant 0 : index
    %53 = vector.load %arg7[%c1_53, %c0_54, %c0_55] : memref<4x32x8xf32, #tpu.memory_space<vmem>>, vector<1x32x8xf32>
    %54 = vector.shape_cast %53 : vector<1x32x8xf32> to vector<32x8xf32>
    %cst_56 = arith.constant dense<0.000000e+00> : vector<16x8xf32>
    %55 = tpu.matmul %2, %54, %cst_56 {dimension_numbers = #tpu.dot_dimension_numbers<[1], [0], [0], [1], [0, 0, 1, 1], [], []>} : vector<16x32xf32>, vector<32x8xf32>, vector<16x8xf32> -> vector<16x8xf32>
    %c1_57 = arith.constant 1 : index
    %c0_58 = arith.constant 0 : index
    %c0_59 = arith.constant 0 : index
    %56 = vector.load %arg10[%c1_57, %c0_58, %c0_59] : memref<4x1x8xf32, #tpu.memory_space<vmem>>, vector<1x1x8xf32>
    %57 = vector.shape_cast %56 : vector<1x1x8xf32> to vector<1x8xf32>
    %58 = vector.broadcast %57 : vector<1x8xf32> to vector<16x8xf32>
    %59 = arith.addf %55, %58 : vector<16x8xf32>
    %c1_60 = arith.constant 1 : index
    %c0_61 = arith.constant 0 : index
    %c0_62 = arith.constant 0 : index
    %60 = vector.load %arg13[%c1_60, %c0_61, %c0_62] : memref<4x16x8xf32, #tpu.memory_space<vmem>>, vector<1x16x8xf32>
    %61 = vector.shape_cast %60 : vector<1x16x8xf32> to vector<16x8xf32>
    %62 = vector.shape_cast %59 : vector<16x8xf32> to vector<1x16x8xf32>
    tpu.vector_store %arg13[%c1_60, %c0_61, %c0_62], %62 {strides = array<i32>} : memref<4x16x8xf32, #tpu.memory_space<vmem>>, vector<1x16x8xf32>,
    %c2 = arith.constant 2 : index
    %c0_63 = arith.constant 0 : index
    %c0_64 = arith.constant 0 : index
    %63 = vector.load %arg5[%c2, %c0_63, %c0_64] : memref<4x32x8xf32, #tpu.memory_space<vmem>>, vector<1x32x8xf32>
    %64 = vector.shape_cast %63 : vector<1x32x8xf32> to vector<32x8xf32>
    %cst_65 = arith.constant dense<0.000000e+00> : vector<16x8xf32>
    %65 = tpu.matmul %0, %64, %cst_65 {dimension_numbers = #tpu.dot_dimension_numbers<[1], [0], [0], [1], [0, 0, 1, 1], [], []>} : vector<16x32xf32>, vector<32x8xf32>, vector<16x8xf32> -> vector<16x8xf32>
    %c2_66 = arith.constant 2 : index
    %c0_67 = arith.constant 0 : index
    %c0_68 = arith.constant 0 : index
    %66 = vector.load %arg8[%c2_66, %c0_67, %c0_68] : memref<4x1x8xf32, #tpu.memory_space<vmem>>, vector<1x1x8xf32>
    %67 = vector.shape_cast %66 : vector<1x1x8xf32> to vector<1x8xf32>
    %68 = vector.broadcast %67 : vector<1x8xf32> to vector<16x8xf32>
    %69 = arith.addf %65, %68 : vector<16x8xf32>
    %c2_69 = arith.constant 2 : index
    %c0_70 = arith.constant 0 : index
    %c0_71 = arith.constant 0 : index
    %70 = vector.load %arg11[%c2_69, %c0_70, %c0_71] : memref<4x16x8xf32, #tpu.memory_space<vmem>>, vector<1x16x8xf32>
    %71 = vector.shape_cast %70 : vector<1x16x8xf32> to vector<16x8xf32>
    %72 = vector.shape_cast %69 : vector<16x8xf32> to vector<1x16x8xf32>
    tpu.vector_store %arg11[%c2_69, %c0_70, %c0_71], %72 {strides = array<i32>} : memref<4x16x8xf32, #tpu.memory_space<vmem>>, vector<1x16x8xf32>,
    %c2_72 = arith.constant 2 : index
    %c0_73 = arith.constant 0 : index
    %c0_74 = arith.constant 0 : index
    %73 = vector.load %arg6[%c2_72, %c0_73, %c0_74] : memref<4x32x8xf32, #tpu.memory_space<vmem>>, vector<1x32x8xf32>
    %74 = vector.shape_cast %73 : vector<1x32x8xf32> to vector<32x8xf32>
    %cst_75 = arith.constant dense<0.000000e+00> : vector<16x8xf32>
    %75 = tpu.matmul %1, %74, %cst_75 {dimension_numbers = #tpu.dot_dimension_numbers<[1], [0], [0], [1], [0, 0, 1, 1], [], []>} : vector<16x32xf32>, vector<32x8xf32>, vector<16x8xf32> -> vector<16x8xf32>
    %c2_76 = arith.constant 2 : index
    %c0_77 = arith.constant 0 : index
    %c0_78 = arith.constant 0 : index
    %76 = vector.load %arg9[%c2_76, %c0_77, %c0_78] : memref<4x1x8xf32, #tpu.memory_space<vmem>>, vector<1x1x8xf32>
    %77 = vector.shape_cast %76 : vector<1x1x8xf32> to vector<1x8xf32>
    %78 = vector.broadcast %77 : vector<1x8xf32> to vector<16x8xf32>
    %79 = arith.addf %75, %78 : vector<16x8xf32>
    %c2_79 = arith.constant 2 : index
    %c0_80 = arith.constant 0 : index
    %c0_81 = arith.constant 0 : index
    %80 = vector.load %arg12[%c2_79, %c0_80, %c0_81] : memref<4x16x8xf32, #tpu.memory_space<vmem>>, vector<1x16x8xf32>
    %81 = vector.shape_cast %80 : vector<1x16x8xf32> to vector<16x8xf32>
    %82 = vector.shape_cast %79 : vector<16x8xf32> to vector<1x16x8xf32>
    tpu.vector_store %arg12[%c2_79, %c0_80, %c0_81], %82 {strides = array<i32>} : memref<4x16x8xf32, #tpu.memory_space<vmem>>, vector<1x16x8xf32>,
    %c2_82 = arith.constant 2 : index
    %c0_83 = arith.constant 0 : index
    %c0_84 = arith.constant 0 : index
    %83 = vector.load %arg7[%c2_82, %c0_83, %c0_84] : memref<4x32x8xf32, #tpu.memory_space<vmem>>, vector<1x32x8xf32>
    %84 = vector.shape_cast %83 : vector<1x32x8xf32> to vector<32x8xf32>
    %cst_85 = arith.constant dense<0.000000e+00> : vector<16x8xf32>
    %85 = tpu.matmul %2, %84, %cst_85 {dimension_numbers = #tpu.dot_dimension_numbers<[1], [0], [0], [1], [0, 0, 1, 1], [], []>} : vector<16x32xf32>, vector<32x8xf32>, vector<16x8xf32> -> vector<16x8xf32>
    %c2_86 = arith.constant 2 : index
    %c0_87 = arith.constant 0 : index
    %c0_88 = arith.constant 0 : index
    %86 = vector.load %arg10[%c2_86, %c0_87, %c0_88] : memref<4x1x8xf32, #tpu.memory_space<vmem>>, vector<1x1x8xf32>
    %87 = vector.shape_cast %86 : vector<1x1x8xf32> to vector<1x8xf32>
    %88 = vector.broadcast %87 : vector<1x8xf32> to vector<16x8xf32>
    %89 = arith.addf %85, %88 : vector<16x8xf32>
    %c2_89 = arith.constant 2 : index
    %c0_90 = arith.constant 0 : index
    %c0_91 = arith.constant 0 : index
    %90 = vector.load %arg13[%c2_89, %c0_90, %c0_91] : memref<4x16x8xf32, #tpu.memory_space<vmem>>, vector<1x16x8xf32>
    %91 = vector.shape_cast %90 : vector<1x16x8xf32> to vector<16x8xf32>
    %92 = vector.shape_cast %89 : vector<16x8xf32> to vector<1x16x8xf32>
    tpu.vector_store %arg13[%c2_89, %c0_90, %c0_91], %92 {strides = array<i32>} : memref<4x16x8xf32, #tpu.memory_space<vmem>>, vector<1x16x8xf32>,
    %c3 = arith.constant 3 : index
    %c0_92 = arith.constant 0 : index
    %c0_93 = arith.constant 0 : index
    %93 = vector.load %arg5[%c3, %c0_92, %c0_93] : memref<4x32x8xf32, #tpu.memory_space<vmem>>, vector<1x32x8xf32>
    %94 = vector.shape_cast %93 : vector<1x32x8xf32> to vector<32x8xf32>
    %cst_94 = arith.constant dense<0.000000e+00> : vector<16x8xf32>
    %95 = tpu.matmul %0, %94, %cst_94 {dimension_numbers = #tpu.dot_dimension_numbers<[1], [0], [0], [1], [0, 0, 1, 1], [], []>} : vector<16x32xf32>, vector<32x8xf32>, vector<16x8xf32> -> vector<16x8xf32>
    %c3_95 = arith.constant 3 : index
    %c0_96 = arith.constant 0 : index
    %c0_97 = arith.constant 0 : index
    %96 = vector.load %arg8[%c3_95, %c0_96, %c0_97] : memref<4x1x8xf32, #tpu.memory_space<vmem>>, vector<1x1x8xf32>
    %97 = vector.shape_cast %96 : vector<1x1x8xf32> to vector<1x8xf32>
    %98 = vector.broadcast %97 : vector<1x8xf32> to vector<16x8xf32>
    %99 = arith.addf %95, %98 : vector<16x8xf32>
    %c3_98 = arith.constant 3 : index
    %c0_99 = arith.constant 0 : index
    %c0_100 = arith.constant 0 : index
    %100 = vector.load %arg11[%c3_98, %c0_99, %c0_100] : memref<4x16x8xf32, #tpu.memory_space<vmem>>, vector<1x16x8xf32>
    %101 = vector.shape_cast %100 : vector<1x16x8xf32> to vector<16x8xf32>
    %102 = vector.shape_cast %99 : vector<16x8xf32> to vector<1x16x8xf32>
    tpu.vector_store %arg11[%c3_98, %c0_99, %c0_100], %102 {strides = array<i32>} : memref<4x16x8xf32, #tpu.memory_space<vmem>>, vector<1x16x8xf32>,
    %c3_101 = arith.constant 3 : index
    %c0_102 = arith.constant 0 : index
    %c0_103 = arith.constant 0 : index
    %103 = vector.load %arg6[%c3_101, %c0_102, %c0_103] : memref<4x32x8xf32, #tpu.memory_space<vmem>>, vector<1x32x8xf32>
    %104 = vector.shape_cast %103 : vector<1x32x8xf32> to vector<32x8xf32>
    %cst_104 = arith.constant dense<0.000000e+00> : vector<16x8xf32>
    %105 = tpu.matmul %1, %104, %cst_104 {dimension_numbers = #tpu.dot_dimension_numbers<[1], [0], [0], [1], [0, 0, 1, 1], [], []>} : vector<16x32xf32>, vector<32x8xf32>, vector<16x8xf32> -> vector<16x8xf32>
    %c3_105 = arith.constant 3 : index
    %c0_106 = arith.constant 0 : index
    %c0_107 = arith.constant 0 : index
    %106 = vector.load %arg9[%c3_105, %c0_106, %c0_107] : memref<4x1x8xf32, #tpu.memory_space<vmem>>, vector<1x1x8xf32>
    %107 = vector.shape_cast %106 : vector<1x1x8xf32> to vector<1x8xf32>
    %108 = vector.broadcast %107 : vector<1x8xf32> to vector<16x8xf32>
    %109 = arith.addf %105, %108 : vector<16x8xf32>
    %c3_108 = arith.constant 3 : index
    %c0_109 = arith.constant 0 : index
    %c0_110 = arith.constant 0 : index
    %110 = vector.load %arg12[%c3_108, %c0_109, %c0_110] : memref<4x16x8xf32, #tpu.memory_space<vmem>>, vector<1x16x8xf32>
    %111 = vector.shape_cast %110 : vector<1x16x8xf32> to vector<16x8xf32>
    %112 = vector.shape_cast %109 : vector<16x8xf32> to vector<1x16x8xf32>
    tpu.vector_store %arg12[%c3_108, %c0_109, %c0_110], %112 {strides = array<i32>} : memref<4x16x8xf32, #tpu.memory_space<vmem>>, vector<1x16x8xf32>,
    %c3_111 = arith.constant 3 : index
    %c0_112 = arith.constant 0 : index
    %c0_113 = arith.constant 0 : index
    %113 = vector.load %arg7[%c3_111, %c0_112, %c0_113] : memref<4x32x8xf32, #tpu.memory_space<vmem>>, vector<1x32x8xf32>
    %114 = vector.shape_cast %113 : vector<1x32x8xf32> to vector<32x8xf32>
    %cst_114 = arith.constant dense<0.000000e+00> : vector<16x8xf32>
    %115 = tpu.matmul %2, %114, %cst_114 {dimension_numbers = #tpu.dot_dimension_numbers<[1], [0], [0], [1], [0, 0, 1, 1], [], []>} : vector<16x32xf32>, vector<32x8xf32>, vector<16x8xf32> -> vector<16x8xf32>
    %c3_115 = arith.constant 3 : index
    %c0_116 = arith.constant 0 : index
    %c0_117 = arith.constant 0 : index
    %116 = vector.load %arg10[%c3_115, %c0_116, %c0_117] : memref<4x1x8xf32, #tpu.memory_space<vmem>>, vector<1x1x8xf32>
    %117 = vector.shape_cast %116 : vector<1x1x8xf32> to vector<1x8xf32>
    %118 = vector.broadcast %117 : vector<1x8xf32> to vector<16x8xf32>
    %119 = arith.addf %115, %118 : vector<16x8xf32>
    %c3_118 = arith.constant 3 : index
    %c0_119 = arith.constant 0 : index
    %c0_120 = arith.constant 0 : index
    %120 = vector.load %arg13[%c3_118, %c0_119, %c0_120] : memref<4x16x8xf32, #tpu.memory_space<vmem>>, vector<1x16x8xf32>
    %121 = vector.shape_cast %120 : vector<1x16x8xf32> to vector<16x8xf32>
    %122 = vector.shape_cast %119 : vector<16x8xf32> to vector<1x16x8xf32>
    tpu.vector_store %arg13[%c3_118, %c0_119, %c0_120], %122 {strides = array<i32>} : memref<4x16x8xf32, #tpu.memory_space<vmem>>, vector<1x16x8xf32>,
    return
  }
  func.func @transform_0(%arg0: i32, %arg1: i32) -> (i32, i32) {
    %c0_i32 = arith.constant 0 : i32
    %c0_i32_0 = arith.constant 0 : i32
    return %arg0, %c0_i32 : i32, i32
  }
  func.func @transform_1(%arg0: i32, %arg1: i32) -> (i32, i32) {
    %c0_i32 = arith.constant 0 : i32
    %c0_i32_0 = arith.constant 0 : i32
    return %arg0, %c0_i32 : i32, i32
  }
  func.func @transform_2(%arg0: i32, %arg1: i32) -> (i32, i32) {
    %c0_i32 = arith.constant 0 : i32
    %c0_i32_0 = arith.constant 0 : i32
    return %arg0, %c0_i32 : i32, i32
  }
  func.func @transform_3(%arg0: i32, %arg1: i32) -> (i32, i32, i32) {
    %c0_i32 = arith.constant 0 : i32
    %c0_i32_0 = arith.constant 0 : i32
    %c0_i32_1 = arith.constant 0 : i32
    return %arg1, %c0_i32, %c0_i32_0 : i32, i32, i32
  }
  func.func @transform_4(%arg0: i32, %arg1: i32) -> (i32, i32, i32) {
    %c0_i32 = arith.constant 0 : i32
    %c0_i32_0 = arith.constant 0 : i32
    %c0_i32_1 = arith.constant 0 : i32
    return %arg1, %c0_i32, %c0_i32_0 : i32, i32, i32
  }
  func.func @transform_5(%arg0: i32, %arg1: i32) -> (i32, i32, i32) {
    %c0_i32 = arith.constant 0 : i32
    %c0_i32_0 = arith.constant 0 : i32
    %c0_i32_1 = arith.constant 0 : i32
    return %arg1, %c0_i32, %c0_i32_0 : i32, i32, i32
  }
  func.func @transform_6(%arg0: i32, %arg1: i32) -> (i32, i32, i32) {
    %c0_i32 = arith.constant 0 : i32
    %c0_i32_0 = arith.constant 0 : i32
    %c0_i32_1 = arith.constant 0 : i32
    return %arg1, %c0_i32, %c0_i32_0 : i32, i32, i32
  }
  func.func @transform_7(%arg0: i32, %arg1: i32) -> (i32, i32, i32) {
    %c0_i32 = arith.constant 0 : i32
    %c0_i32_0 = arith.constant 0 : i32
    %c0_i32_1 = arith.constant 0 : i32
    return %arg1, %c0_i32, %c0_i32_0 : i32, i32, i32
  }
  func.func @transform_8(%arg0: i32, %arg1: i32) -> (i32, i32, i32) {
    %c0_i32 = arith.constant 0 : i32
    %c0_i32_0 = arith.constant 0 : i32
    %c0_i32_1 = arith.constant 0 : i32
    return %arg1, %c0_i32, %c0_i32_0 : i32, i32, i32
  }
  func.func @transform_9(%arg0: i32, %arg1: i32) -> (i32, i32, i32) {
    %c0_i32 = arith.constant 0 : i32
    %c0_i32_0 = arith.constant 0 : i32
    return %arg1, %arg0, %c0_i32 : i32, i32, i32
  }
  func.func @transform_10(%arg0: i32, %arg1: i32) -> (i32, i32, i32) {
    %c0_i32 = arith.constant 0 : i32
    %c0_i32_0 = arith.constant 0 : i32
    return %arg1, %arg0, %c0_i32 : i32, i32, i32
  }
  func.func @transform_11(%arg0: i32, %arg1: i32) -> (i32, i32, i32) {
    %c0_i32 = arith.constant 0 : i32
    %c0_i32_0 = arith.constant 0 : i32
    return %arg1, %arg0, %c0_i32 : i32, i32, i32
  }
}

</mosaic_0001>

<llo_original>
// kernel: tpu_custom_call.1
$region0: #{tpu_custom_call.1}
  #allocation0 [shape = 'u32[]', space=smem, size = 0x4, offset = 0x4, fixed_abs, tag = 'smem constant byte address 0x4 - core index']
  #allocation1 [shape = 'u32[144,128]{1,0:T(1,128)}', space=vmem, size = 0x12000, scoped, tag = 'internal scratch']
  %s0 = inlined_call_operand.vmem [shape: f32[16,32], index: 0, kind: input, shape index: {}]
  %s1 = inlined_call_operand.vmem [shape: f32[16,32], index: 1, kind: input, shape index: {}]
  %s2 = inlined_call_operand.vmem [shape: f32[16,32], index: 2, kind: input, shape index: {}]
  %s3 = inlined_call_operand.vmem [shape: f32[4,32,8], index: 3, kind: input, shape index: {}]
  %s4 = inlined_call_operand.vmem [shape: f32[4,32,8], index: 4, kind: input, shape index: {}]
  %s5 = inlined_call_operand.vmem [shape: f32[4,32,8], index: 5, kind: input, shape index: {}]
  %s6 = inlined_call_operand.vmem [shape: f32[4,1,8], index: 6, kind: input, shape index: {}]
  %s7 = inlined_call_operand.vmem [shape: f32[4,1,8], index: 7, kind: input, shape index: {}]
  %s8 = inlined_call_operand.vmem [shape: f32[4,1,8], index: 8, kind: input, shape index: {}]
  %s9 = inlined_call_operand.vmem [shape: f32[4,16,8], index: 9, kind: output, shape index: {0}]
  %s10 = inlined_call_operand.vmem [shape: f32[4,16,8], index: 10, kind: output, shape index: {1}]
  %s11 = inlined_call_operand.vmem [shape: f32[4,16,8], index: 11, kind: output, shape index: {2}]
  %12 = xla_tuple %s9, %s10, %s11
  %s13 = sld [smem:[#allocation0]]
  $region62: #{tpu_custom_call.1} parent=0
    _
  %s15 = ssub.s32 1, %s13
  %s16 = scalar_select 0, %s15, %s13
  // Predicated region
  $region2: #{tpu_custom_call.1} parent=0 // pred_check
    _
  $region3: #{tpu_custom_call.1} parent=0 // pred_check_branch
    %18 = sbr.rel (0) target = $region5
  $region4: #{tpu_custom_call.1} parent=0 // pred_region
    _
  $region5: #{tpu_custom_call.1} parent=0 // pred_fallthru
    _
  // Predicated region
  $region6: #{tpu_custom_call.1} parent=0 // pred_check
    _
  $region7: #{tpu_custom_call.1} parent=0 // pred_check_branch
    %20 = sbr.rel (0) target = $region9
  $region8: #{tpu_custom_call.1} parent=0 // pred_region
    _
  $region9: #{tpu_custom_call.1} parent=0 // pred_fallthru
    _
  // Predicated region
  $region10: #{tpu_custom_call.1} parent=0 // pred_check
    _
  $region11: #{tpu_custom_call.1} parent=0 // pred_check_branch
    %22 = sbr.rel (0) target = $region13
  $region12: #{tpu_custom_call.1} parent=0 // pred_region
    _
  $region13: #{tpu_custom_call.1} parent=0 // pred_fallthru
    _
  // Predicated region
  $region14: #{tpu_custom_call.1} parent=0 // pred_check
    _
  $region15: #{tpu_custom_call.1} parent=0 // pred_check_branch
    %24 = sbr.rel (0) target = $region17
  $region16: #{tpu_custom_call.1} parent=0 // pred_region
    _
  $region17: #{tpu_custom_call.1} parent=0 // pred_fallthru
    _
  // Predicated region
  $region18: #{tpu_custom_call.1} parent=0 // pred_check
    _
  $region19: #{tpu_custom_call.1} parent=0 // pred_check_branch
    %26 = sbr.rel (0) target = $region21
  $region20: #{tpu_custom_call.1} parent=0 // pred_region
    _
  $region21: #{tpu_custom_call.1} parent=0 // pred_fallthru
    _
  // Predicated region
  $region22: #{tpu_custom_call.1} parent=0 // pred_check
    _
  $region23: #{tpu_custom_call.1} parent=0 // pred_check_branch
    %28 = sbr.rel (0) target = $region25
  $region24: #{tpu_custom_call.1} parent=0 // pred_region
    _
  $region25: #{tpu_custom_call.1} parent=0 // pred_fallthru
    _
  // Predicated region
  $region26: #{tpu_custom_call.1} parent=0 // pred_check
    _
  $region27: #{tpu_custom_call.1} parent=0 // pred_check_branch
    %30 = sbr.rel (0) target = $region29
  $region28: #{tpu_custom_call.1} parent=0 // pred_region
    _
  $region29: #{tpu_custom_call.1} parent=0 // pred_fallthru
    _
  // Predicated region
  $region30: #{tpu_custom_call.1} parent=0 // pred_check
    _
  $region31: #{tpu_custom_call.1} parent=0 // pred_check_branch
    %32 = sbr.rel (0) target = $region33
  $region32: #{tpu_custom_call.1} parent=0 // pred_region
    _
  $region33: #{tpu_custom_call.1} parent=0 // pred_fallthru
    _
  // Predicated region
  $region34: #{tpu_custom_call.1} parent=0 // pred_check
    _
  $region35: #{tpu_custom_call.1} parent=0 // pred_check_branch
    %34 = sbr.rel (0) target = $region37
  $region36: #{tpu_custom_call.1} parent=0 // pred_region
    _
  $region37: #{tpu_custom_call.1} parent=0 // pred_fallthru
    _
  %v35 = vld [vmem:[%s0] sm:$0xff]
  %v36 = vld [vmem:[%s0 + $0x8] sm:$0xff]
  %v37 = vld [vmem:[%s1] sm:$0xff]
  %v38 = vld [vmem:[%s1 + $0x8] sm:$0xff]
  %v39 = vld [vmem:[%s2] sm:$0xff]
  %v40 = vld [vmem:[%s2 + $0x8] sm:$0xff]
  %v41 = vld [vmem:[%s3] sm:$0xff]
  %v42 = vld [vmem:[%s3 + $0x8] sm:$0xff]
  %v43 = vld [vmem:[%s3 + $0x10] sm:$0xff]
  %v44 = vld [vmem:[%s3 + $0x18] sm:$0xff]
  %v45 = vld [vmem:[%s6] sm:$0x1]
  %v47 = vlaneseq
  %v48 = vshrl.u32 %v47, 7
  %v49 = vsub.s32 0, %v48
  %v50 = vrot.slane %v45, %v49
  %vm52 = vcmask 261120
  %v54 = vsel %vm52, %v35, 0
  %v57 = vsel %vm52, %v36, 0
  %59 = vmatprep.subr.mxu0 0.0
  %60 = vmatpush1.msra.mxu0 %v41
  %61 = vmatprep.subr.mxu0 0.0
  %62 = vmatpush1.msra.mxu0 %v42
  %63 = vmatprep.subr.mxu0 0.0
  %64 = vmatpush1.msra.mxu0 %v43
  %65 = vmatprep.subr.mxu0 0.0
  %66 = vmatpush1.msra.mxu0 %v44
  %67 = vmatprep.subr.mxu0 0.0
  %68 = vmatpush1.msra.mxu0 0.0
  %69 = vmatprep.subr.mxu0 0.0
  %70 = vmatpush1.msra.mxu0 0.0
  %71 = vmatprep.subr.mxu0 0.0
  %72 = vmatpush1.msra.mxu0 0.0
  %73 = vmatprep.subr.mxu0 0.0
  %74 = vmatpush1.msra.mxu0 0.0
  %75 = vmatprep.subr.mxu0 0.0
  %76 = vmatpush1.msra.mxu0 0.0
  %77 = vmatprep.subr.mxu0 0.0
  %78 = vmatpush1.msra.mxu0 0.0
  %79 = vmatprep.subr.mxu0 0.0
  %80 = vmatpush1.msra.mxu0 0.0
  %81 = vmatprep.subr.mxu0 0.0
  %82 = vmatpush1.msra.mxu0 0.0
  %83 = vmatprep.subr.mxu0 0.0
  %84 = vmatpush1.msra.mxu0 0.0
  %85 = vmatprep.subr.mxu0 0.0
  %86 = vmatpush1.msra.mxu0 0.0
  %87 = vmatprep.subr.mxu0 0.0
  %88 = vmatpush1.msra.mxu0 0.0
  %89 = vmatprep.subr.mxu0 0.0
  %90 = vmatpush1.msra.mxu0 0.0
  %91 = vmatprep.subr.mxu0 0.0
  %92 = vmatpush1.msra.mxu0 0.0
  %93 = vmatprep.subr.mxu0 0.0
  %94 = vmatpush1.msra.mxu0 0.0
  %95 = vmatprep.subr.mxu0 0.0
  %96 = vmatpush1.msra.mxu0 0.0
  %97 = vmatprep.subr.mxu0 0.0
  %98 = vmatpush1.msra.mxu0 0.0
  %99 = vmatprep.subr.mxu0 0.0
  %100 = vmatpush1.msra.mxu0 0.0
  %101 = vmatprep.subr.mxu0 0.0
  %102 = vmatpush1.msra.mxu0 0.0
  %103 = vmatprep.subr.mxu0 0.0
  %104 = vmatpush1.msra.mxu0 0.0
  %105 = vmatprep.subr.mxu0 0.0
  %106 = vmatpush1.msra.mxu0 0.0
  %107 = vmatprep.subr.mxu0 0.0
  %108 = vmatpush1.msra.mxu0 0.0
  %109 = vmatprep.subr.mxu0 0.0
  %110 = vmatpush1.msra.mxu0 0.0
  %111 = vmatprep.subr.mxu0 0.0
  %112 = vmatpush1.msra.mxu0 0.0
  %113 = vmatprep.subr.mxu0 0.0
  %114 = vmatpush1.msra.mxu0 0.0
  %115 = vmatprep.subr.mxu0 0.0
  %116 = vmatpush1.msra.mxu0 0.0
  %117 = vmatprep.subr.mxu0 0.0
  %118 = vmatpush1.msra.mxu0 0.0
  %119 = vmatprep.subr.mxu0 0.0
  %120 = vmatpush1.msra.mxu0 0.0
  %121 = vmatprep.subr.mxu0 0.0
  %122 = vmatpush1.msra.mxu0 0.0
  %123 = vmatprep.mubr.f32.mxu0 0.0
  %124 = vmatmul.mubr.f32.gmra.mrb[0].mxu0 %v54
  %v125 = vpop.f32.mrb[0].mxu0
  %v126 = vadd.f32 %v50, %v125
  %v127 = vpop.f32.mrb[0].mxu0
  %128 = vmatprep.mubr.f32.mxu0 0.0
  %129 = vmatmul.mubr.f32.gmra.mrb[0].mxu0 %v57
  %v130 = vpop.f32.mrb[0].mxu0
  %v131 = vadd.f32 %v50, %v130
  %v132 = vpop.f32.mrb[0].mxu0
  %133 = vdwg.mxu0
  %vm134 = vcmask 64512
  %135 = vst.msk [vmem:[%s9] sm:$0xff] %vm134, %v126
  %136 = vst.msk [vmem:[%s9 + $0x8] sm:$0xff] %vm134, %v131
  %v137 = vld [vmem:[%s4] sm:$0xff]
  %v138 = vld [vmem:[%s4 + $0x8] sm:$0xff]
  %v139 = vld [vmem:[%s4 + $0x10] sm:$0xff]
  %v140 = vld [vmem:[%s4 + $0x18] sm:$0xff]
  %v141 = vld [vmem:[%s7] sm:$0x1]
  %v143 = vlaneseq
  %v144 = vshrl.u32 %v143, 7
  %v145 = vsub.s32 0, %v144
  %v146 = vrot.slane %v141, %v145
  %v149 = vsel %vm52, %v37, 0
  %v152 = vsel %vm52, %v38, 0
  %154 = vmatprep.subr.mxu0 0.0
  %155 = vmatpush1.msra.mxu0 %v137
  %156 = vmatprep.subr.mxu0 0.0
  %157 = vmatpush1.msra.mxu0 %v138
  %158 = vmatprep.subr.mxu0 0.0
  %159 = vmatpush1.msra.mxu0 %v139
  %160 = vmatprep.subr.mxu0 0.0
  %161 = vmatpush1.msra.mxu0 %v140
  %162 = vmatprep.subr.mxu0 0.0
  %163 = vmatpush1.msra.mxu0 0.0
  %164 = vmatprep.subr.mxu0 0.0
  %165 = vmatpush1.msra.mxu0 0.0
  %166 = vmatprep.subr.mxu0 0.0
  %167 = vmatpush1.msra.mxu0 0.0
  %168 = vmatprep.subr.mxu0 0.0
  %169 = vmatpush1.msra.mxu0 0.0
  %170 = vmatprep.subr.mxu0 0.0
  %171 = vmatpush1.msra.mxu0 0.0
  %172 = vmatprep.subr.mxu0 0.0
  %173 = vmatpush1.msra.mxu0 0.0
  %174 = vmatprep.subr.mxu0 0.0
  %175 = vmatpush1.msra.mxu0 0.0
  %176 = vmatprep.subr.mxu0 0.0
  %177 = vmatpush1.msra.mxu0 0.0
  %178 = vmatprep.subr.mxu0 0.0
  %179 = vmatpush1.msra.mxu0 0.0
  %180 = vmatprep.subr.mxu0 0.0
  %181 = vmatpush1.msra.mxu0 0.0
  %182 = vmatprep.subr.mxu0 0.0
  %183 = vmatpush1.msra.mxu0 0.0
  %184 = vmatprep.subr.mxu0 0.0
  %185 = vmatpush1.msra.mxu0 0.0
  %186 = vmatprep.subr.mxu0 0.0
  %187 = vmatpush1.msra.mxu0 0.0
  %188 = vmatprep.subr.mxu0 0.0
  %189 = vmatpush1.msra.mxu0 0.0
  %190 = vmatprep.subr.mxu0 0.0
  %191 = vmatpush1.msra.mxu0 0.0
  %192 = vmatprep.subr.mxu0 0.0
  %193 = vmatpush1.msra.mxu0 0.0
  %194 = vmatprep.subr.mxu0 0.0
  %195 = vmatpush1.msra.mxu0 0.0
  %196 = vmatprep.subr.mxu0 0.0
  %197 = vmatpush1.msra.mxu0 0.0
  %198 = vmatprep.subr.mxu0 0.0
  %199 = vmatpush1.msra.mxu0 0.0
  %200 = vmatprep.subr.mxu0 0.0
  %201 = vmatpush1.msra.mxu0 0.0
  %202 = vmatprep.subr.mxu0 0.0
  %203 = vmatpush1.msra.mxu0 0.0
  %204 = vmatprep.subr.mxu0 0.0
  %205 = vmatpush1.msra.mxu0 0.0
  %206 = vmatprep.subr.mxu0 0.0
  %207 = vmatpush1.msra.mxu0 0.0
  %208 = vmatprep.subr.mxu0 0.0
  %209 = vmatpush1.msra.mxu0 0.0
  %210 = vmatprep.subr.mxu0 0.0
  %211 = vmatpush1.msra.mxu0 0.0
  %212 = vmatprep.subr.mxu0 0.0
  %213 = vmatpush1.msra.mxu0 0.0
  %214 = vmatprep.subr.mxu0 0.0
  %215 = vmatpush1.msra.mxu0 0.0
  %216 = vmatprep.subr.mxu0 0.0
  %217 = vmatpush1.msra.mxu0 0.0
  %218 = vmatprep.mubr.f32.mxu0 0.0
  %219 = vmatmul.mubr.f32.gmra.mrb[0].mxu0 %v149
  %v220 = vpop.f32.mrb[0].mxu0
  %v221 = vadd.f32 %v146, %v220
  %v222 = vpop.f32.mrb[0].mxu0
  %223 = vmatprep.mubr.f32.mxu0 0.0
  %224 = vmatmul.mubr.f32.gmra.mrb[0].mxu0 %v152
  %v225 = vpop.f32.mrb[0].mxu0
  %v226 = vadd.f32 %v146, %v225
  %v227 = vpop.f32.mrb[0].mxu0
  %228 = vdwg.mxu0
  %229 = vst.msk [vmem:[%s10] sm:$0xff] %vm134, %v221
  %230 = vst.msk [vmem:[%s10 + $0x8] sm:$0xff] %vm134, %v226
  %v231 = vld [vmem:[%s5] sm:$0xff]
  %v232 = vld [vmem:[%s5 + $0x8] sm:$0xff]
  %v233 = vld [vmem:[%s5 + $0x10] sm:$0xff]
  %v234 = vld [vmem:[%s5 + $0x18] sm:$0xff]
  %v235 = vld [vmem:[%s8] sm:$0x1]
  %v237 = vlaneseq
  %v238 = vshrl.u32 %v237, 7
  %v239 = vsub.s32 0, %v238
  %v240 = vrot.slane %v235, %v239
  %v243 = vsel %vm52, %v39, 0
  %v246 = vsel %vm52, %v40, 0
  %248 = vmatprep.subr.mxu0 0.0
  %249 = vmatpush1.msra.mxu0 %v231
  %250 = vmatprep.subr.mxu0 0.0
  %251 = vmatpush1.msra.mxu0 %v232
  %252 = vmatprep.subr.mxu0 0.0
  %253 = vmatpush1.msra.mxu0 %v233
  %254 = vmatprep.subr.mxu0 0.0
  %255 = vmatpush1.msra.mxu0 %v234
  %256 = vmatprep.subr.mxu0 0.0
  %257 = vmatpush1.msra.mxu0 0.0
  %258 = vmatprep.subr.mxu0 0.0
  %259 = vmatpush1.msra.mxu0 0.0
  %260 = vmatprep.subr.mxu0 0.0
  %261 = vmatpush1.msra.mxu0 0.0
  %262 = vmatprep.subr.mxu0 0.0
  %263 = vmatpush1.msra.mxu0 0.0
  %264 = vmatprep.subr.mxu0 0.0
  %265 = vmatpush1.msra.mxu0 0.0
  %266 = vmatprep.subr.mxu0 0.0
  %267 = vmatpush1.msra.mxu0 0.0
  %268 = vmatprep.subr.mxu0 0.0
  %269 = vmatpush1.msra.mxu0 0.0
  %270 = vmatprep.subr.mxu0 0.0
  %271 = vmatpush1.msra.mxu0 0.0
  %272 = vmatprep.subr.mxu0 0.0
  %273 = vmatpush1.msra.mxu0 0.0
  %274 = vmatprep.subr.mxu0 0.0
  %275 = vmatpush1.msra.mxu0 0.0
  %276 = vmatprep.subr.mxu0 0.0
  %277 = vmatpush1.msra.mxu0 0.0
  %278 = vmatprep.subr.mxu0 0.0
  %279 = vmatpush1.msra.mxu0 0.0
  %280 = vmatprep.subr.mxu0 0.0
  %281 = vmatpush1.msra.mxu0 0.0
  %282 = vmatprep.subr.mxu0 0.0
  %283 = vmatpush1.msra.mxu0 0.0
  %284 = vmatprep.subr.mxu0 0.0
  %285 = vmatpush1.msra.mxu0 0.0
  %286 = vmatprep.subr.mxu0 0.0
  %287 = vmatpush1.msra.mxu0 0.0
  %288 = vmatprep.subr.mxu0 0.0
  %289 = vmatpush1.msra.mxu0 0.0
  %290 = vmatprep.subr.mxu0 0.0
  %291 = vmatpush1.msra.mxu0 0.0
  %292 = vmatprep.subr.mxu0 0.0
  %293 = vmatpush1.msra.mxu0 0.0
  %294 = vmatprep.subr.mxu0 0.0
  %295 = vmatpush1.msra.mxu0 0.0
  %296 = vmatprep.subr.mxu0 0.0
  %297 = vmatpush1.msra.mxu0 0.0
  %298 = vmatprep.subr.mxu0 0.0
  %299 = vmatpush1.msra.mxu0 0.0
  %300 = vmatprep.subr.mxu0 0.0
  %301 = vmatpush1.msra.mxu0 0.0
  %302 = vmatprep.subr.mxu0 0.0
  %303 = vmatpush1.msra.mxu0 0.0
  %304 = vmatprep.subr.mxu0 0.0
  %305 = vmatpush1.msra.mxu0 0.0
  %306 = vmatprep.subr.mxu0 0.0
  %307 = vmatpush1.msra.mxu0 0.0
  %308 = vmatprep.subr.mxu0 0.0
  %309 = vmatpush1.msra.mxu0 0.0
  %310 = vmatprep.subr.mxu0 0.0
  %311 = vmatpush1.msra.mxu0 0.0
  %312 = vmatprep.mubr.f32.mxu0 0.0
  %313 = vmatmul.mubr.f32.gmra.mrb[0].mxu0 %v243
  %v314 = vpop.f32.mrb[0].mxu0
  %v315 = vadd.f32 %v240, %v314
  %v316 = vpop.f32.mrb[0].mxu0
  %317 = vmatprep.mubr.f32.mxu0 0.0
  %318 = vmatmul.mubr.f32.gmra.mrb[0].mxu0 %v246
  %v319 = vpop.f32.mrb[0].mxu0
  %v320 = vadd.f32 %v240, %v319
  %v321 = vpop.f32.mrb[0].mxu0
  %322 = vdwg.mxu0
  %323 = vst.msk [vmem:[%s11] sm:$0xff] %vm134, %v315
  %324 = vst.msk [vmem:[%s11 + $0x8] sm:$0xff] %vm134, %v320
  %s325 = scalar_lea.vmem %s3, 32
  %v326 = vld [vmem:[%s325] sm:$0xff]
  %v327 = vld [vmem:[%s325 + $0x8] sm:$0xff]
  %v328 = vld [vmem:[%s325 + $0x10] sm:$0xff]
  %v329 = vld [vmem:[%s325 + $0x18] sm:$0xff]
  %s330 = scalar_lea.vmem %s6, 1
  %v331 = vld [vmem:[%s330] sm:$0x1]
  %v333 = vlaneseq
  %v334 = vshrl.u32 %v333, 7
  %v335 = vsub.s32 0, %v334
  %v336 = vrot.slane %v331, %v335
  %338 = vmatprep.subr.mxu0 0.0
  %339 = vmatpush1.msra.mxu0 %v326
  %340 = vmatprep.subr.mxu0 0.0
  %341 = vmatpush1.msra.mxu0 %v327
  %342 = vmatprep.subr.mxu0 0.0
  %343 = vmatpush1.msra.mxu0 %v328
  %344 = vmatprep.subr.mxu0 0.0
  %345 = vmatpush1.msra.mxu0 %v329
  %346 = vmatprep.subr.mxu0 0.0
  %347 = vmatpush1.msra.mxu0 0.0
  %348 = vmatprep.subr.mxu0 0.0
  %349 = vmatpush1.msra.mxu0 0.0
  %350 = vmatprep.subr.mxu0 0.0
  %351 = vmatpush1.msra.mxu0 0.0
  %352 = vmatprep.subr.mxu0 0.0
  %353 = vmatpush1.msra.mxu0 0.0
  %354 = vmatprep.subr.mxu0 0.0
  %355 = vmatpush1.msra.mxu0 0.0
  %356 = vmatprep.subr.mxu0 0.0
  %357 = vmatpush1.msra.mxu0 0.0
  %358 = vmatprep.subr.mxu0 0.0
  %359 = vmatpush1.msra.mxu0 0.0
  %360 = vmatprep.subr.mxu0 0.0
  %361 = vmatpush1.msra.mxu0 0.0
  %362 = vmatprep.subr.mxu0 0.0
  %363 = vmatpush1.msra.mxu0 0.0
  %364 = vmatprep.subr.mxu0 0.0
  %365 = vmatpush1.msra.mxu0 0.0
  %366 = vmatprep.subr.mxu0 0.0
  %367 = vmatpush1.msra.mxu0 0.0
  %368 = vmatprep.subr.mxu0 0.0
  %369 = vmatpush1.msra.mxu0 0.0
  %370 = vmatprep.subr.mxu0 0.0
  %371 = vmatpush1.msra.mxu0 0.0
  %372 = vmatprep.subr.mxu0 0.0
  %373 = vmatpush1.msra.mxu0 0.0
  %374 = vmatprep.subr.mxu0 0.0
  %375 = vmatpush1.msra.mxu0 0.0
  %376 = vmatprep.subr.mxu0 0.0
  %377 = vmatpush1.msra.mxu0 0.0
  %378 = vmatprep.subr.mxu0 0.0
  %379 = vmatpush1.msra.mxu0 0.0
  %380 = vmatprep.subr.mxu0 0.0
  %381 = vmatpush1.msra.mxu0 0.0
  %382 = vmatprep.subr.mxu0 0.0
  %383 = vmatpush1.msra.mxu0 0.0
  %384 = vmatprep.subr.mxu0 0.0
  %385 = vmatpush1.msra.mxu0 0.0
  %386 = vmatprep.subr.mxu0 0.0
  %387 = vmatpush1.msra.mxu0 0.0
  %388 = vmatprep.subr.mxu0 0.0
  %389 = vmatpush1.msra.mxu0 0.0
  %390 = vmatprep.subr.mxu0 0.0
  %391 = vmatpush1.msra.mxu0 0.0
  %392 = vmatprep.subr.mxu0 0.0
  %393 = vmatpush1.msra.mxu0 0.0
  %394 = vmatprep.subr.mxu0 0.0
  %395 = vmatpush1.msra.mxu0 0.0
  %396 = vmatprep.subr.mxu0 0.0
  %397 = vmatpush1.msra.mxu0 0.0
  %398 = vmatprep.subr.mxu0 0.0
  %399 = vmatpush1.msra.mxu0 0.0
  %400 = vmatprep.subr.mxu0 0.0
  %401 = vmatpush1.msra.mxu0 0.0
  %402 = vmatprep.mubr.f32.mxu0 0.0
  %403 = vmatmul.mubr.f32.gmra.mrb[0].mxu0 %v54
  %v404 = vpop.f32.mrb[0].mxu0
  %v405 = vadd.f32 %v336, %v404
  %v406 = vpop.f32.mrb[0].mxu0
  %407 = vmatprep.mubr.f32.mxu0 0.0
  %408 = vmatmul.mubr.f32.gmra.mrb[0].mxu0 %v57
  %v409 = vpop.f32.mrb[0].mxu0
  %v410 = vadd.f32 %v336, %v409
  %v411 = vpop.f32.mrb[0].mxu0
  %412 = vdwg.mxu0
  %s413 = scalar_lea.vmem %s9, 16
  %414 = vst.msk [vmem:[%s413] sm:$0xff] %vm134, %v405
  %415 = vst.msk [vmem:[%s413 + $0x8] sm:$0xff] %vm134, %v410
  %s416 = scalar_lea.vmem %s4, 32
  %v417 = vld [vmem:[%s416] sm:$0xff]
  %v418 = vld [vmem:[%s416 + $0x8] sm:$0xff]
  %v419 = vld [vmem:[%s416 + $0x10] sm:$0xff]
  %v420 = vld [vmem:[%s416 + $0x18] sm:$0xff]
  %s421 = scalar_lea.vmem %s7, 1
  %v422 = vld [vmem:[%s421] sm:$0x1]
  %v424 = vlaneseq
  %v425 = vshrl.u32 %v424, 7
  %v426 = vsub.s32 0, %v425
  %v427 = vrot.slane %v422, %v426
  %429 = vmatprep.subr.mxu0 0.0
  %430 = vmatpush1.msra.mxu0 %v417
  %431 = vmatprep.subr.mxu0 0.0
  %432 = vmatpush1.msra.mxu0 %v418
  %433 = vmatprep.subr.mxu0 0.0
  %434 = vmatpush1.msra.mxu0 %v419
  %435 = vmatprep.subr.mxu0 0.0
  %436 = vmatpush1.msra.mxu0 %v420
  %437 = vmatprep.subr.mxu0 0.0
  %438 = vmatpush1.msra.mxu0 0.0
  %439 = vmatprep.subr.mxu0 0.0
  %440 = vmatpush1.msra.mxu0 0.0
  %441 = vmatprep.subr.mxu0 0.0
  %442 = vmatpush1.msra.mxu0 0.0
  %443 = vmatprep.subr.mxu0 0.0
  %444 = vmatpush1.msra.mxu0 0.0
  %445 = vmatprep.subr.mxu0 0.0
  %446 = vmatpush1.msra.mxu0 0.0
  %447 = vmatprep.subr.mxu0 0.0
  %448 = vmatpush1.msra.mxu0 0.0
  %449 = vmatprep.subr.mxu0 0.0
  %450 = vmatpush1.msra.mxu0 0.0
  %451 = vmatprep.subr.mxu0 0.0
  %452 = vmatpush1.msra.mxu0 0.0
  %453 = vmatprep.subr.mxu0 0.0
  %454 = vmatpush1.msra.mxu0 0.0
  %455 = vmatprep.subr.mxu0 0.0
  %456 = vmatpush1.msra.mxu0 0.0
  %457 = vmatprep.subr.mxu0 0.0
  %458 = vmatpush1.msra.mxu0 0.0
  %459 = vmatprep.subr.mxu0 0.0
  %460 = vmatpush1.msra.mxu0 0.0
  %461 = vmatprep.subr.mxu0 0.0
  %462 = vmatpush1.msra.mxu0 0.0
  %463 = vmatprep.subr.mxu0 0.0
  %464 = vmatpush1.msra.mxu0 0.0
  %465 = vmatprep.subr.mxu0 0.0
  %466 = vmatpush1.msra.mxu0 0.0
  %467 = vmatprep.subr.mxu0 0.0
  %468 = vmatpush1.msra.mxu0 0.0
  %469 = vmatprep.subr.mxu0 0.0
  %470 = vmatpush1.msra.mxu0 0.0
  %471 = vmatprep.subr.mxu0 0.0
  %472 = vmatpush1.msra.mxu0 0.0
  %473 = vmatprep.subr.mxu0 0.0
  %474 = vmatpush1.msra.mxu0 0.0
  %475 = vmatprep.subr.mxu0 0.0
  %476 = vmatpush1.msra.mxu0 0.0
  %477 = vmatprep.subr.mxu0 0.0
  %478 = vmatpush1.msra.mxu0 0.0
  %479 = vmatprep.subr.mxu0 0.0
  %480 = vmatpush1.msra.mxu0 0.0
  %481 = vmatprep.subr.mxu0 0.0
  %482 = vmatpush1.msra.mxu0 0.0
  %483 = vmatprep.subr.mxu0 0.0
  %484 = vmatpush1.msra.mxu0 0.0
  %485 = vmatprep.subr.mxu0 0.0
  %486 = vmatpush1.msra.mxu0 0.0
  %487 = vmatprep.subr.mxu0 0.0
  %488 = vmatpush1.msra.mxu0 0.0
  %489 = vmatprep.subr.mxu0 0.0
  %490 = vmatpush1.msra.mxu0 0.0
  %491 = vmatprep.subr.mxu0 0.0
  %492 = vmatpush1.msra.mxu0 0.0
  %493 = vmatprep.mubr.f32.mxu0 0.0
  %494 = vmatmul.mubr.f32.gmra.mrb[0].mxu0 %v149
  %v495 = vpop.f32.mrb[0].mxu0
  %v496 = vadd.f32 %v427, %v495
  %v497 = vpop.f32.mrb[0].mxu0
  %498 = vmatprep.mubr.f32.mxu0 0.0
  %499 = vmatmul.mubr.f32.gmra.mrb[0].mxu0 %v152
  %v500 = vpop.f32.mrb[0].mxu0
  %v501 = vadd.f32 %v427, %v500
  %v502 = vpop.f32.mrb[0].mxu0
  %503 = vdwg.mxu0
  %s504 = scalar_lea.vmem %s10, 16
  %505 = vst.msk [vmem:[%s504] sm:$0xff] %vm134, %v496
  %506 = vst.msk [vmem:[%s504 + $0x8] sm:$0xff] %vm134, %v501
  %s507 = scalar_lea.vmem %s5, 32
  %v508 = vld [vmem:[%s507] sm:$0xff]
  %v509 = vld [vmem:[%s507 + $0x8] sm:$0xff]
  %v510 = vld [vmem:[%s507 + $0x10] sm:$0xff]
  %v511 = vld [vmem:[%s507 + $0x18] sm:$0xff]
  %s512 = scalar_lea.vmem %s8, 1
  %v513 = vld [vmem:[%s512] sm:$0x1]
  %v515 = vlaneseq
  %v516 = vshrl.u32 %v515, 7
  %v517 = vsub.s32 0, %v516
  %v518 = vrot.slane %v513, %v517
  %520 = vmatprep.subr.mxu0 0.0
  %521 = vmatpush1.msra.mxu0 %v508
  %522 = vmatprep.subr.mxu0 0.0
  %523 = vmatpush1.msra.mxu0 %v509
  %524 = vmatprep.subr.mxu0 0.0
  %525 = vmatpush1.msra.mxu0 %v510
  %526 = vmatprep.subr.mxu0 0.0
  %527 = vmatpush1.msra.mxu0 %v511
  %528 = vmatprep.subr.mxu0 0.0
  %529 = vmatpush1.msra.mxu0 0.0
  %530 = vmatprep.subr.mxu0 0.0
  %531 = vmatpush1.msra.mxu0 0.0
  %532 = vmatprep.subr.mxu0 0.0
  %533 = vmatpush1.msra.mxu0 0.0
  %534 = vmatprep.subr.mxu0 0.0
  %535 = vmatpush1.msra.mxu0 0.0
  %536 = vmatprep.subr.mxu0 0.0
  %537 = vmatpush1.msra.mxu0 0.0
  %538 = vmatprep.subr.mxu0 0.0
  %539 = vmatpush1.msra.mxu0 0.0
  %540 = vmatprep.subr.mxu0 0.0
  %541 = vmatpush1.msra.mxu0 0.0
  %542 = vmatprep.subr.mxu0 0.0
  %543 = vmatpush1.msra.mxu0 0.0
  %544 = vmatprep.subr.mxu0 0.0
  %545 = vmatpush1.msra.mxu0 0.0
  %546 = vmatprep.subr.mxu0 0.0
  %547 = vmatpush1.msra.mxu0 0.0
  %548 = vmatprep.subr.mxu0 0.0
  %549 = vmatpush1.msra.mxu0 0.0
  %550 = vmatprep.subr.mxu0 0.0
  %551 = vmatpush1.msra.mxu0 0.0
  %552 = vmatprep.subr.mxu0 0.0
  %553 = vmatpush1.msra.mxu0 0.0
  %554 = vmatprep.subr.mxu0 0.0
  %555 = vmatpush1.msra.mxu0 0.0
  %556 = vmatprep.subr.mxu0 0.0
  %557 = vmatpush1.msra.mxu0 0.0
  %558 = vmatprep.subr.mxu0 0.0
  %559 = vmatpush1.msra.mxu0 0.0
  %560 = vmatprep.subr.mxu0 0.0
  %561 = vmatpush1.msra.mxu0 0.0
  %562 = vmatprep.subr.mxu0 0.0
  %563 = vmatpush1.msra.mxu0 0.0
  %564 = vmatprep.subr.mxu0 0.0
  %565 = vmatpush1.msra.mxu0 0.0
  %566 = vmatprep.subr.mxu0 0.0
  %567 = vmatpush1.msra.mxu0 0.0
  %568 = vmatprep.subr.mxu0 0.0
  %569 = vmatpush1.msra.mxu0 0.0
  %570 = vmatprep.subr.mxu0 0.0
  %571 = vmatpush1.msra.mxu0 0.0
  %572 = vmatprep.subr.mxu0 0.0
  %573 = vmatpush1.msra.mxu0 0.0
  %574 = vmatprep.subr.mxu0 0.0
  %575 = vmatpush1.msra.mxu0 0.0
  %576 = vmatprep.subr.mxu0 0.0
  %577 = vmatpush1.msra.mxu0 0.0
  %578 = vmatprep.subr.mxu0 0.0
  %579 = vmatpush1.msra.mxu0 0.0
  %580 = vmatprep.subr.mxu0 0.0
  %581 = vmatpush1.msra.mxu0 0.0
  %582 = vmatprep.subr.mxu0 0.0
  %583 = vmatpush1.msra.mxu0 0.0
  %584 = vmatprep.mubr.f32.mxu0 0.0
  %585 = vmatmul.mubr.f32.gmra.mrb[0].mxu0 %v243
  %v586 = vpop.f32.mrb[0].mxu0
  %v587 = vadd.f32 %v518, %v586
  %v588 = vpop.f32.mrb[0].mxu0
  %589 = vmatprep.mubr.f32.mxu0 0.0
  %590 = vmatmul.mubr.f32.gmra.mrb[0].mxu0 %v246
  %v591 = vpop.f32.mrb[0].mxu0
  %v592 = vadd.f32 %v518, %v591
  %v593 = vpop.f32.mrb[0].mxu0
  %594 = vdwg.mxu0
  %s595 = scalar_lea.vmem %s11, 16
  %596 = vst.msk [vmem:[%s595] sm:$0xff] %vm134, %v587
  %597 = vst.msk [vmem:[%s595 + $0x8] sm:$0xff] %vm134, %v592
  %s598 = scalar_lea.vmem %s3, 64
  %v599 = vld [vmem:[%s598] sm:$0xff]
  %v600 = vld [vmem:[%s598 + $0x8] sm:$0xff]
  %v601 = vld [vmem:[%s598 + $0x10] sm:$0xff]
  %v602 = vld [vmem:[%s598 + $0x18] sm:$0xff]
  %s603 = scalar_lea.vmem %s6, 2
  %v604 = vld [vmem:[%s603] sm:$0x1]
  %v606 = vlaneseq
  %v607 = vshrl.u32 %v606, 7
  %v608 = vsub.s32 0, %v607
  %v609 = vrot.slane %v604, %v608
  %611 = vmatprep.subr.mxu0 0.0
  %612 = vmatpush1.msra.mxu0 %v599
  %613 = vmatprep.subr.mxu0 0.0
  %614 = vmatpush1.msra.mxu0 %v600
  %615 = vmatprep.subr.mxu0 0.0
  %616 = vmatpush1.msra.mxu0 %v601
  %617 = vmatprep.subr.mxu0 0.0
  %618 = vmatpush1.msra.mxu0 %v602
  %619 = vmatprep.subr.mxu0 0.0
  %620 = vmatpush1.msra.mxu0 0.0
  %621 = vmatprep.subr.mxu0 0.0
  %622 = vmatpush1.msra.mxu0 0.0
  %623 = vmatprep.subr.mxu0 0.0
  %624 = vmatpush1.msra.mxu0 0.0
  %625 = vmatprep.subr.mxu0 0.0
  %626 = vmatpush1.msra.mxu0 0.0
  %627 = vmatprep.subr.mxu0 0.0
  %628 = vmatpush1.msra.mxu0 0.0
  %629 = vmatprep.subr.mxu0 0.0
  %630 = vmatpush1.msra.mxu0 0.0
  %631 = vmatprep.subr.mxu0 0.0
  %632 = vmatpush1.msra.mxu0 0.0
  %633 = vmatprep.subr.mxu0 0.0
  %634 = vmatpush1.msra.mxu0 0.0
  %635 = vmatprep.subr.mxu0 0.0
  %636 = vmatpush1.msra.mxu0 0.0
  %637 = vmatprep.subr.mxu0 0.0
  %638 = vmatpush1.msra.mxu0 0.0
  %639 = vmatprep.subr.mxu0 0.0
  %640 = vmatpush1.msra.mxu0 0.0
  %641 = vmatprep.subr.mxu0 0.0
  %642 = vmatpush1.msra.mxu0 0.0
  %643 = vmatprep.subr.mxu0 0.0
  %644 = vmatpush1.msra.mxu0 0.0
  %645 = vmatprep.subr.mxu0 0.0
  %646 = vmatpush1.msra.mxu0 0.0
  %647 = vmatprep.subr.mxu0 0.0
  %648 = vmatpush1.msra.mxu0 0.0
  %649 = vmatprep.subr.mxu0 0.0
  %650 = vmatpush1.msra.mxu0 0.0
  %651 = vmatprep.subr.mxu0 0.0
  %652 = vmatpush1.msra.mxu0 0.0
  %653 = vmatprep.subr.mxu0 0.0
  %654 = vmatpush1.msra.mxu0 0.0
  %655 = vmatprep.subr.mxu0 0.0
  %656 = vmatpush1.msra.mxu0 0.0
  %657 = vmatprep.subr.mxu0 0.0
  %658 = vmatpush1.msra.mxu0 0.0
  %659 = vmatprep.subr.mxu0 0.0
  %660 = vmatpush1.msra.mxu0 0.0
  %661 = vmatprep.subr.mxu0 0.0
  %662 = vmatpush1.msra.mxu0 0.0
  %663 = vmatprep.subr.mxu0 0.0
  %664 = vmatpush1.msra.mxu0 0.0
  %665 = vmatprep.subr.mxu0 0.0
  %666 = vmatpush1.msra.mxu0 0.0
  %667 = vmatprep.subr.mxu0 0.0
  %668 = vmatpush1.msra.mxu0 0.0
  %669 = vmatprep.subr.mxu0 0.0
  %670 = vmatpush1.msra.mxu0 0.0
  %671 = vmatprep.subr.mxu0 0.0
  %672 = vmatpush1.msra.mxu0 0.0
  %673 = vmatprep.subr.mxu0 0.0
  %674 = vmatpush1.msra.mxu0 0.0
  %675 = vmatprep.mubr.f32.mxu0 0.0
  %676 = vmatmul.mubr.f32.gmra.mrb[0].mxu0 %v54
  %v677 = vpop.f32.mrb[0].mxu0
  %v678 = vadd.f32 %v609, %v677
  %v679 = vpop.f32.mrb[0].mxu0
  %680 = vmatprep.mubr.f32.mxu0 0.0
  %681 = vmatmul.mubr.f32.gmra.mrb[0].mxu0 %v57
  %v682 = vpop.f32.mrb[0].mxu0
  %v683 = vadd.f32 %v609, %v682
  %v684 = vpop.f32.mrb[0].mxu0
  %685 = vdwg.mxu0
  %s686 = scalar_lea.vmem %s9, 32
  %687 = vst.msk [vmem:[%s686] sm:$0xff] %vm134, %v678
  %688 = vst.msk [vmem:[%s686 + $0x8] sm:$0xff] %vm134, %v683
  %s689 = scalar_lea.vmem %s4, 64
  %v690 = vld [vmem:[%s689] sm:$0xff]
  %v691 = vld [vmem:[%s689 + $0x8] sm:$0xff]
  %v692 = vld [vmem:[%s689 + $0x10] sm:$0xff]
  %v693 = vld [vmem:[%s689 + $0x18] sm:$0xff]
  %s694 = scalar_lea.vmem %s7, 2
  %v695 = vld [vmem:[%s694] sm:$0x1]
  %v697 = vlaneseq
  %v698 = vshrl.u32 %v697, 7
  %v699 = vsub.s32 0, %v698
  %v700 = vrot.slane %v695, %v699
  %702 = vmatprep.subr.mxu0 0.0
  %703 = vmatpush1.msra.mxu0 %v690
  %704 = vmatprep.subr.mxu0 0.0
  %705 = vmatpush1.msra.mxu0 %v691
  %706 = vmatprep.subr.mxu0 0.0
  %707 = vmatpush1.msra.mxu0 %v692
  %708 = vmatprep.subr.mxu0 0.0
  %709 = vmatpush1.msra.mxu0 %v693
  %710 = vmatprep.subr.mxu0 0.0
  %711 = vmatpush1.msra.mxu0 0.0
  %712 = vmatprep.subr.mxu0 0.0
  %713 = vmatpush1.msra.mxu0 0.0
  %714 = vmatprep.subr.mxu0 0.0
  %715 = vmatpush1.msra.mxu0 0.0
  %716 = vmatprep.subr.mxu0 0.0
  %717 = vmatpush1.msra.mxu0 0.0
  %718 = vmatprep.subr.mxu0 0.0
  %719 = vmatpush1.msra.mxu0 0.0
  %720 = vmatprep.subr.mxu0 0.0
  %721 = vmatpush1.msra.mxu0 0.0
  %722 = vmatprep.subr.mxu0 0.0
  %723 = vmatpush1.msra.mxu0 0.0
  %724 = vmatprep.subr.mxu0 0.0
  %725 = vmatpush1.msra.mxu0 0.0
  %726 = vmatprep.subr.mxu0 0.0
  %727 = vmatpush1.msra.mxu0 0.0
  %728 = vmatprep.subr.mxu0 0.0
  %729 = vmatpush1.msra.mxu0 0.0
  %730 = vmatprep.subr.mxu0 0.0
  %731 = vmatpush1.msra.mxu0 0.0
  %732 = vmatprep.subr.mxu0 0.0
  %733 = vmatpush1.msra.mxu0 0.0
  %734 = vmatprep.subr.mxu0 0.0
  %735 = vmatpush1.msra.mxu0 0.0
  %736 = vmatprep.subr.mxu0 0.0
  %737 = vmatpush1.msra.mxu0 0.0
  %738 = vmatprep.subr.mxu0 0.0
  %739 = vmatpush1.msra.mxu0 0.0
  %740 = vmatprep.subr.mxu0 0.0
  %741 = vmatpush1.msra.mxu0 0.0
  %742 = vmatprep.subr.mxu0 0.0
  %743 = vmatpush1.msra.mxu0 0.0
  %744 = vmatprep.subr.mxu0 0.0
  %745 = vmatpush1.msra.mxu0 0.0
  %746 = vmatprep.subr.mxu0 0.0
  %747 = vmatpush1.msra.mxu0 0.0
  %748 = vmatprep.subr.mxu0 0.0
  %749 = vmatpush1.msra.mxu0 0.0
  %750 = vmatprep.subr.mxu0 0.0
  %751 = vmatpush1.msra.mxu0 0.0
  %752 = vmatprep.subr.mxu0 0.0
  %753 = vmatpush1.msra.mxu0 0.0
  %754 = vmatprep.subr.mxu0 0.0
  %755 = vmatpush1.msra.mxu0 0.0
  %756 = vmatprep.subr.mxu0 0.0
  %757 = vmatpush1.msra.mxu0 0.0
  %758 = vmatprep.subr.mxu0 0.0
  %759 = vmatpush1.msra.mxu0 0.0
  %760 = vmatprep.subr.mxu0 0.0
  %761 = vmatpush1.msra.mxu0 0.0
  %762 = vmatprep.subr.mxu0 0.0
  %763 = vmatpush1.msra.mxu0 0.0
  %764 = vmatprep.subr.mxu0 0.0
  %765 = vmatpush1.msra.mxu0 0.0
  %766 = vmatprep.mubr.f32.mxu0 0.0
  %767 = vmatmul.mubr.f32.gmra.mrb[0].mxu0 %v149
  %v768 = vpop.f32.mrb[0].mxu0
  %v769 = vadd.f32 %v700, %v768
  %v770 = vpop.f32.mrb[0].mxu0
  %771 = vmatprep.mubr.f32.mxu0 0.0
  %772 = vmatmul.mubr.f32.gmra.mrb[0].mxu0 %v152
  %v773 = vpop.f32.mrb[0].mxu0
  %v774 = vadd.f32 %v700, %v773
  %v775 = vpop.f32.mrb[0].mxu0
  %776 = vdwg.mxu0
  %s777 = scalar_lea.vmem %s10, 32
  %778 = vst.msk [vmem:[%s777] sm:$0xff] %vm134, %v769
  %779 = vst.msk [vmem:[%s777 + $0x8] sm:$0xff] %vm134, %v774
  %s780 = scalar_lea.vmem %s5, 64
  %v781 = vld [vmem:[%s780] sm:$0xff]
  %v782 = vld [vmem:[%s780 + $0x8] sm:$0xff]
  %v783 = vld [vmem:[%s780 + $0x10] sm:$0xff]
  %v784 = vld [vmem:[%s780 + $0x18] sm:$0xff]
  %s785 = scalar_lea.vmem %s8, 2
  %v786 = vld [vmem:[%s785] sm:$0x1]
  %v788 = vlaneseq
  %v789 = vshrl.u32 %v788, 7
  %v790 = vsub.s32 0, %v789
  %v791 = vrot.slane %v786, %v790
  %793 = vmatprep.subr.mxu0 0.0
  %794 = vmatpush1.msra.mxu0 %v781
  %795 = vmatprep.subr.mxu0 0.0
  %796 = vmatpush1.msra.mxu0 %v782
  %797 = vmatprep.subr.mxu0 0.0
  %798 = vmatpush1.msra.mxu0 %v783
  %799 = vmatprep.subr.mxu0 0.0
  %800 = vmatpush1.msra.mxu0 %v784
  %801 = vmatprep.subr.mxu0 0.0
  %802 = vmatpush1.msra.mxu0 0.0
  %803 = vmatprep.subr.mxu0 0.0
  %804 = vmatpush1.msra.mxu0 0.0
  %805 = vmatprep.subr.mxu0 0.0
  %806 = vmatpush1.msra.mxu0 0.0
  %807 = vmatprep.subr.mxu0 0.0
  %808 = vmatpush1.msra.mxu0 0.0
  %809 = vmatprep.subr.mxu0 0.0
  %810 = vmatpush1.msra.mxu0 0.0
  %811 = vmatprep.subr.mxu0 0.0
  %812 = vmatpush1.msra.mxu0 0.0
  %813 = vmatprep.subr.mxu0 0.0
  %814 = vmatpush1.msra.mxu0 0.0
  %815 = vmatprep.subr.mxu0 0.0
  %816 = vmatpush1.msra.mxu0 0.0
  %817 = vmatprep.subr.mxu0 0.0
  %818 = vmatpush1.msra.mxu0 0.0
  %819 = vmatprep.subr.mxu0 0.0
  %820 = vmatpush1.msra.mxu0 0.0
  %821 = vmatprep.subr.mxu0 0.0
  %822 = vmatpush1.msra.mxu0 0.0
  %823 = vmatprep.subr.mxu0 0.0
  %824 = vmatpush1.msra.mxu0 0.0
  %825 = vmatprep.subr.mxu0 0.0
  %826 = vmatpush1.msra.mxu0 0.0
  %827 = vmatprep.subr.mxu0 0.0
  %828 = vmatpush1.msra.mxu0 0.0
  %829 = vmatprep.subr.mxu0 0.0
  %830 = vmatpush1.msra.mxu0 0.0
  %831 = vmatprep.subr.mxu0 0.0
  %832 = vmatpush1.msra.mxu0 0.0
  %833 = vmatprep.subr.mxu0 0.0
  %834 = vmatpush1.msra.mxu0 0.0
  %835 = vmatprep.subr.mxu0 0.0
  %836 = vmatpush1.msra.mxu0 0.0
  %837 = vmatprep.subr.mxu0 0.0
  %838 = vmatpush1.msra.mxu0 0.0
  %839 = vmatprep.subr.mxu0 0.0
  %840 = vmatpush1.msra.mxu0 0.0
  %841 = vmatprep.subr.mxu0 0.0
  %842 = vmatpush1.msra.mxu0 0.0
  %843 = vmatprep.subr.mxu0 0.0
  %844 = vmatpush1.msra.mxu0 0.0
  %845 = vmatprep.subr.mxu0 0.0
  %846 = vmatpush1.msra.mxu0 0.0
  %847 = vmatprep.subr.mxu0 0.0
  %848 = vmatpush1.msra.mxu0 0.0
  %849 = vmatprep.subr.mxu0 0.0
  %850 = vmatpush1.msra.mxu0 0.0
  %851 = vmatprep.subr.mxu0 0.0
  %852 = vmatpush1.msra.mxu0 0.0
  %853 = vmatprep.subr.mxu0 0.0
  %854 = vmatpush1.msra.mxu0 0.0
  %855 = vmatprep.subr.mxu0 0.0
  %856 = vmatpush1.msra.mxu0 0.0
  %857 = vmatprep.mubr.f32.mxu0 0.0
  %858 = vmatmul.mubr.f32.gmra.mrb[0].mxu0 %v243
  %v859 = vpop.f32.mrb[0].mxu0
  %v860 = vadd.f32 %v791, %v859
  %v861 = vpop.f32.mrb[0].mxu0
  %862 = vmatprep.mubr.f32.mxu0 0.0
  %863 = vmatmul.mubr.f32.gmra.mrb[0].mxu0 %v246
  %v864 = vpop.f32.mrb[0].mxu0
  %v865 = vadd.f32 %v791, %v864
  %v866 = vpop.f32.mrb[0].mxu0
  %867 = vdwg.mxu0
  %s868 = scalar_lea.vmem %s11, 32
  %869 = vst.msk [vmem:[%s868] sm:$0xff] %vm134, %v860
  %870 = vst.msk [vmem:[%s868 + $0x8] sm:$0xff] %vm134, %v865
  %s871 = scalar_lea.vmem %s3, 96
  %v872 = vld [vmem:[%s871] sm:$0xff]
  %v873 = vld [vmem:[%s871 + $0x8] sm:$0xff]
  %v874 = vld [vmem:[%s871 + $0x10] sm:$0xff]
  %v875 = vld [vmem:[%s871 + $0x18] sm:$0xff]
  %s876 = scalar_lea.vmem %s6, 3
  %v877 = vld [vmem:[%s876] sm:$0x1]
  %v879 = vlaneseq
  %v880 = vshrl.u32 %v879, 7
  %v881 = vsub.s32 0, %v880
  %v882 = vrot.slane %v877, %v881
  %884 = vmatprep.subr.mxu0 0.0
  %885 = vmatpush1.msra.mxu0 %v872
  %886 = vmatprep.subr.mxu0 0.0
  %887 = vmatpush1.msra.mxu0 %v873
  %888 = vmatprep.subr.mxu0 0.0
  %889 = vmatpush1.msra.mxu0 %v874
  %890 = vmatprep.subr.mxu0 0.0
  %891 = vmatpush1.msra.mxu0 %v875
  %892 = vmatprep.subr.mxu0 0.0
  %893 = vmatpush1.msra.mxu0 0.0
  %894 = vmatprep.subr.mxu0 0.0
  %895 = vmatpush1.msra.mxu0 0.0
  %896 = vmatprep.subr.mxu0 0.0
  %897 = vmatpush1.msra.mxu0 0.0
  %898 = vmatprep.subr.mxu0 0.0
  %899 = vmatpush1.msra.mxu0 0.0
  %900 = vmatprep.subr.mxu0 0.0
  %901 = vmatpush1.msra.mxu0 0.0
  %902 = vmatprep.subr.mxu0 0.0
  %903 = vmatpush1.msra.mxu0 0.0
  %904 = vmatprep.subr.mxu0 0.0
  %905 = vmatpush1.msra.mxu0 0.0
  %906 = vmatprep.subr.mxu0 0.0
  %907 = vmatpush1.msra.mxu0 0.0
  %908 = vmatprep.subr.mxu0 0.0
  %909 = vmatpush1.msra.mxu0 0.0
  %910 = vmatprep.subr.mxu0 0.0
  %911 = vmatpush1.msra.mxu0 0.0
  %912 = vmatprep.subr.mxu0 0.0
  %913 = vmatpush1.msra.mxu0 0.0
  %914 = vmatprep.subr.mxu0 0.0
  %915 = vmatpush1.msra.mxu0 0.0
  %916 = vmatprep.subr.mxu0 0.0
  %917 = vmatpush1.msra.mxu0 0.0
  %918 = vmatprep.subr.mxu0 0.0
  %919 = vmatpush1.msra.mxu0 0.0
  %920 = vmatprep.subr.mxu0 0.0
  %921 = vmatpush1.msra.mxu0 0.0
  %922 = vmatprep.subr.mxu0 0.0
  %923 = vmatpush1.msra.mxu0 0.0
  %924 = vmatprep.subr.mxu0 0.0
  %925 = vmatpush1.msra.mxu0 0.0
  %926 = vmatprep.subr.mxu0 0.0
  %927 = vmatpush1.msra.mxu0 0.0
  %928 = vmatprep.subr.mxu0 0.0
  %929 = vmatpush1.msra.mxu0 0.0
  %930 = vmatprep.subr.mxu0 0.0
  %931 = vmatpush1.msra.mxu0 0.0
  %932 = vmatprep.subr.mxu0 0.0
  %933 = vmatpush1.msra.mxu0 0.0
  %934 = vmatprep.subr.mxu0 0.0
  %935 = vmatpush1.msra.mxu0 0.0
  %936 = vmatprep.subr.mxu0 0.0
  %937 = vmatpush1.msra.mxu0 0.0
  %938 = vmatprep.subr.mxu0 0.0
  %939 = vmatpush1.msra.mxu0 0.0
  %940 = vmatprep.subr.mxu0 0.0
  %941 = vmatpush1.msra.mxu0 0.0
  %942 = vmatprep.subr.mxu0 0.0
  %943 = vmatpush1.msra.mxu0 0.0
  %944 = vmatprep.subr.mxu0 0.0
  %945 = vmatpush1.msra.mxu0 0.0
  %946 = vmatprep.subr.mxu0 0.0
  %947 = vmatpush1.msra.mxu0 0.0
  %948 = vmatprep.mubr.f32.mxu0 0.0
  %949 = vmatmul.mubr.f32.gmra.mrb[0].mxu0 %v54
  %v950 = vpop.f32.mrb[0].mxu0
  %v951 = vadd.f32 %v882, %v950
  %v952 = vpop.f32.mrb[0].mxu0
  %953 = vmatprep.mubr.f32.mxu0 0.0
  %954 = vmatmul.mubr.f32.gmra.mrb[0].mxu0 %v57
  %v955 = vpop.f32.mrb[0].mxu0
  %v956 = vadd.f32 %v882, %v955
  %v957 = vpop.f32.mrb[0].mxu0
  %958 = vdwg.mxu0
  %s959 = scalar_lea.vmem %s9, 48
  %960 = vst.msk [vmem:[%s959] sm:$0xff] %vm134, %v951
  %961 = vst.msk [vmem:[%s959 + $0x8] sm:$0xff] %vm134, %v956
  %s962 = scalar_lea.vmem %s4, 96
  %v963 = vld [vmem:[%s962] sm:$0xff]
  %v964 = vld [vmem:[%s962 + $0x8] sm:$0xff]
  %v965 = vld [vmem:[%s962 + $0x10] sm:$0xff]
  %v966 = vld [vmem:[%s962 + $0x18] sm:$0xff]
  %s967 = scalar_lea.vmem %s7, 3
  %v968 = vld [vmem:[%s967] sm:$0x1]
  %v970 = vlaneseq
  %v971 = vshrl.u32 %v970, 7
  %v972 = vsub.s32 0, %v971
  %v973 = vrot.slane %v968, %v972
  %975 = vmatprep.subr.mxu0 0.0
  %976 = vmatpush1.msra.mxu0 %v963
  %977 = vmatprep.subr.mxu0 0.0
  %978 = vmatpush1.msra.mxu0 %v964
  %979 = vmatprep.subr.mxu0 0.0
  %980 = vmatpush1.msra.mxu0 %v965
  %981 = vmatprep.subr.mxu0 0.0
  %982 = vmatpush1.msra.mxu0 %v966
  %983 = vmatprep.subr.mxu0 0.0
  %984 = vmatpush1.msra.mxu0 0.0
  %985 = vmatprep.subr.mxu0 0.0
  %986 = vmatpush1.msra.mxu0 0.0
  %987 = vmatprep.subr.mxu0 0.0
  %988 = vmatpush1.msra.mxu0 0.0
  %989 = vmatprep.subr.mxu0 0.0
  %990 = vmatpush1.msra.mxu0 0.0
  %991 = vmatprep.subr.mxu0 0.0
  %992 = vmatpush1.msra.mxu0 0.0
  %993 = vmatprep.subr.mxu0 0.0
  %994 = vmatpush1.msra.mxu0 0.0
  %995 = vmatprep.subr.mxu0 0.0
  %996 = vmatpush1.msra.mxu0 0.0
  %997 = vmatprep.subr.mxu0 0.0
  %998 = vmatpush1.msra.mxu0 0.0
  %999 = vmatprep.subr.mxu0 0.0
  %1000 = vmatpush1.msra.mxu0 0.0
  %1001 = vmatprep.subr.mxu0 0.0
  %1002 = vmatpush1.msra.mxu0 0.0
  %1003 = vmatprep.subr.mxu0 0.0
  %1004 = vmatpush1.msra.mxu0 0.0
  %1005 = vmatprep.subr.mxu0 0.0
  %1006 = vmatpush1.msra.mxu0 0.0
  %1007 = vmatprep.subr.mxu0 0.0
  %1008 = vmatpush1.msra.mxu0 0.0
  %1009 = vmatprep.subr.mxu0 0.0
  %1010 = vmatpush1.msra.mxu0 0.0
  %1011 = vmatprep.subr.mxu0 0.0
  %1012 = vmatpush1.msra.mxu0 0.0
  %1013 = vmatprep.subr.mxu0 0.0
  %1014 = vmatpush1.msra.mxu0 0.0
  %1015 = vmatprep.subr.mxu0 0.0
  %1016 = vmatpush1.msra.mxu0 0.0
  %1017 = vmatprep.subr.mxu0 0.0
  %1018 = vmatpush1.msra.mxu0 0.0
  %1019 = vmatprep.subr.mxu0 0.0
  %1020 = vmatpush1.msra.mxu0 0.0
  %1021 = vmatprep.subr.mxu0 0.0
  %1022 = vmatpush1.msra.mxu0 0.0
  %1023 = vmatprep.subr.mxu0 0.0
  %1024 = vmatpush1.msra.mxu0 0.0
  %1025 = vmatprep.subr.mxu0 0.0
  %1026 = vmatpush1.msra.mxu0 0.0
  %1027 = vmatprep.subr.mxu0 0.0
  %1028 = vmatpush1.msra.mxu0 0.0
  %1029 = vmatprep.subr.mxu0 0.0
  %1030 = vmatpush1.msra.mxu0 0.0
  %1031 = vmatprep.subr.mxu0 0.0
  %1032 = vmatpush1.msra.mxu0 0.0
  %1033 = vmatprep.subr.mxu0 0.0
  %1034 = vmatpush1.msra.mxu0 0.0
  %1035 = vmatprep.subr.mxu0 0.0
  %1036 = vmatpush1.msra.mxu0 0.0
  %1037 = vmatprep.subr.mxu0 0.0
  %1038 = vmatpush1.msra.mxu0 0.0
  %1039 = vmatprep.mubr.f32.mxu0 0.0
  %1040 = vmatmul.mubr.f32.gmra.mrb[0].mxu0 %v149
  %v1041 = vpop.f32.mrb[0].mxu0
  %v1042 = vadd.f32 %v973, %v1041
  %v1043 = vpop.f32.mrb[0].mxu0
  %1044 = vmatprep.mubr.f32.mxu0 0.0
  %1045 = vmatmul.mubr.f32.gmra.mrb[0].mxu0 %v152
  %v1046 = vpop.f32.mrb[0].mxu0
  %v1047 = vadd.f32 %v973, %v1046
  %v1048 = vpop.f32.mrb[0].mxu0
  %1049 = vdwg.mxu0
  %s1050 = scalar_lea.vmem %s10, 48
  %1051 = vst.msk [vmem:[%s1050] sm:$0xff] %vm134, %v1042
  %1052 = vst.msk [vmem:[%s1050 + $0x8] sm:$0xff] %vm134, %v1047
  %s1053 = scalar_lea.vmem %s5, 96
  %v1054 = vld [vmem:[%s1053] sm:$0xff]
  %v1055 = vld [vmem:[%s1053 + $0x8] sm:$0xff]
  %v1056 = vld [vmem:[%s1053 + $0x10] sm:$0xff]
  %v1057 = vld [vmem:[%s1053 + $0x18] sm:$0xff]
  %s1058 = scalar_lea.vmem %s8, 3
  %v1059 = vld [vmem:[%s1058] sm:$0x1]
  %v1061 = vlaneseq
  %v1062 = vshrl.u32 %v1061, 7
  %v1063 = vsub.s32 0, %v1062
  %v1064 = vrot.slane %v1059, %v1063
  %1066 = vmatprep.subr.mxu0 0.0
  %1067 = vmatpush1.msra.mxu0 %v1054
  %1068 = vmatprep.subr.mxu0 0.0
  %1069 = vmatpush1.msra.mxu0 %v1055
  %1070 = vmatprep.subr.mxu0 0.0
  %1071 = vmatpush1.msra.mxu0 %v1056
  %1072 = vmatprep.subr.mxu0 0.0
  %1073 = vmatpush1.msra.mxu0 %v1057
  %1074 = vmatprep.subr.mxu0 0.0
  %1075 = vmatpush1.msra.mxu0 0.0
  %1076 = vmatprep.subr.mxu0 0.0
  %1077 = vmatpush1.msra.mxu0 0.0
  %1078 = vmatprep.subr.mxu0 0.0
  %1079 = vmatpush1.msra.mxu0 0.0
  %1080 = vmatprep.subr.mxu0 0.0
  %1081 = vmatpush1.msra.mxu0 0.0
  %1082 = vmatprep.subr.mxu0 0.0
  %1083 = vmatpush1.msra.mxu0 0.0
  %1084 = vmatprep.subr.mxu0 0.0
  %1085 = vmatpush1.msra.mxu0 0.0
  %1086 = vmatprep.subr.mxu0 0.0
  %1087 = vmatpush1.msra.mxu0 0.0
  %1088 = vmatprep.subr.mxu0 0.0
  %1089 = vmatpush1.msra.mxu0 0.0
  %1090 = vmatprep.subr.mxu0 0.0
  %1091 = vmatpush1.msra.mxu0 0.0
  %1092 = vmatprep.subr.mxu0 0.0
  %1093 = vmatpush1.msra.mxu0 0.0
  %1094 = vmatprep.subr.mxu0 0.0
  %1095 = vmatpush1.msra.mxu0 0.0
  %1096 = vmatprep.subr.mxu0 0.0
  %1097 = vmatpush1.msra.mxu0 0.0
  %1098 = vmatprep.subr.mxu0 0.0
  %1099 = vmatpush1.msra.mxu0 0.0
  %1100 = vmatprep.subr.mxu0 0.0
  %1101 = vmatpush1.msra.mxu0 0.0
  %1102 = vmatprep.subr.mxu0 0.0
  %1103 = vmatpush1.msra.mxu0 0.0
  %1104 = vmatprep.subr.mxu0 0.0
  %1105 = vmatpush1.msra.mxu0 0.0
  %1106 = vmatprep.subr.mxu0 0.0
  %1107 = vmatpush1.msra.mxu0 0.0
  %1108 = vmatprep.subr.mxu0 0.0
  %1109 = vmatpush1.msra.mxu0 0.0
  %1110 = vmatprep.subr.mxu0 0.0
  %1111 = vmatpush1.msra.mxu0 0.0
  %1112 = vmatprep.subr.mxu0 0.0
  %1113 = vmatpush1.msra.mxu0 0.0
  %1114 = vmatprep.subr.mxu0 0.0
  %1115 = vmatpush1.msra.mxu0 0.0
  %1116 = vmatprep.subr.mxu0 0.0
  %1117 = vmatpush1.msra.mxu0 0.0
  %1118 = vmatprep.subr.mxu0 0.0
  %1119 = vmatpush1.msra.mxu0 0.0
  %1120 = vmatprep.subr.mxu0 0.0
  %1121 = vmatpush1.msra.mxu0 0.0
  %1122 = vmatprep.subr.mxu0 0.0
  %1123 = vmatpush1.msra.mxu0 0.0
  %1124 = vmatprep.subr.mxu0 0.0
  %1125 = vmatpush1.msra.mxu0 0.0
  %1126 = vmatprep.subr.mxu0 0.0
  %1127 = vmatpush1.msra.mxu0 0.0
  %1128 = vmatprep.subr.mxu0 0.0
  %1129 = vmatpush1.msra.mxu0 0.0
  %1130 = vmatprep.mubr.f32.mxu0 0.0
  %1131 = vmatmul.mubr.f32.gmra.mrb[0].mxu0 %v243
  %v1132 = vpop.f32.mrb[0].mxu0
  %v1133 = vadd.f32 %v1064, %v1132
  %v1134 = vpop.f32.mrb[0].mxu0
  %1135 = vmatprep.mubr.f32.mxu0 0.0
  %1136 = vmatmul.mubr.f32.gmra.mrb[0].mxu0 %v246
  %v1137 = vpop.f32.mrb[0].mxu0
  %v1138 = vadd.f32 %v1064, %v1137
  %v1139 = vpop.f32.mrb[0].mxu0
  %1140 = vdwg.mxu0
  %s1141 = scalar_lea.vmem %s11, 48
  %1142 = vst.msk [vmem:[%s1141] sm:$0xff] %vm134, %v1133
  %1143 = vst.msk [vmem:[%s1141 + $0x8] sm:$0xff] %vm134, %v1138
  // Predicated region
  $region38: #{tpu_custom_call.1} parent=0 // pred_check
    _
  $region39: #{tpu_custom_call.1} parent=0 // pred_check_branch
    %1145 = sbr.rel (0) target = $region41
  $region40: #{tpu_custom_call.1} parent=0 // pred_region
    _
  $region41: #{tpu_custom_call.1} parent=0 // pred_fallthru
    _
  // Predicated region
  $region42: #{tpu_custom_call.1} parent=0 // pred_check
    _
  $region43: #{tpu_custom_call.1} parent=0 // pred_check_branch
    %1147 = sbr.rel (0) target = $region45
  $region44: #{tpu_custom_call.1} parent=0 // pred_region
    _
  $region45: #{tpu_custom_call.1} parent=0 // pred_fallthru
    _
  // Predicated region
  $region46: #{tpu_custom_call.1} parent=0 // pred_check
    _
  $region47: #{tpu_custom_call.1} parent=0 // pred_check_branch
    %1149 = sbr.rel (0) target = $region49
  $region48: #{tpu_custom_call.1} parent=0 // pred_region
    _
  $region49: #{tpu_custom_call.1} parent=0 // pred_fallthru
    _
  // Predicated region
  $region50: #{tpu_custom_call.1} parent=0 // pred_check
    _
  $region51: #{tpu_custom_call.1} parent=0 // pred_check_branch
    %1151 = sbr.rel (0) target = $region53
  $region52: #{tpu_custom_call.1} parent=0 // pred_region
    _
  $region53: #{tpu_custom_call.1} parent=0 // pred_fallthru
    _
  // Predicated region
  $region54: #{tpu_custom_call.1} parent=0 // pred_check
    _
  $region55: #{tpu_custom_call.1} parent=0 // pred_check_branch
    %1153 = sbr.rel (0) target = $region57
  $region56: #{tpu_custom_call.1} parent=0 // pred_region
    _
  $region57: #{tpu_custom_call.1} parent=0 // pred_fallthru
    _
  // Predicated region
  $region58: #{tpu_custom_call.1} parent=0 // pred_check
    _
  $region59: #{tpu_custom_call.1} parent=0 // pred_check_branch
    %1155 = sbr.rel (0) target = $region61
  $region60: #{tpu_custom_call.1} parent=0 // pred_region
    _
  $region61: #{tpu_custom_call.1} parent=0 // pred_fallthru
    _

</llo_original>
